<compile_context>
chip_gen: v7x
topology: tpu7x:2x2x1
jax: 0.10.0
libtpu: 0.0.40
codegen_flags: <defaults>
</compile_context>

<pallas_src>
import functools

import jax
import jax.numpy as jnp
from jax.experimental import pallas as pl
from jax.experimental.pallas import tpu as pltpu

_LANE = 128
_TARGET_BLOCK_BYTES = 4 * 1024 * 1024  # ~4 MiB x-blocks: >=85% of HBM roofline, short fill/drain


# --------------------------------------------------------------------------- #
# Kernels
# --------------------------------------------------------------------------- #
def _ln_kernel_rowsum(x_ref, gamma_ref, beta_ref, o_ref, *, eps, inv_d):
    """Generic path (any D): full-lane reductions on the XLU."""
    x = x_ref[...].astype(jnp.float32)
    inv_d = jnp.float32(inv_d)
    mean = jnp.sum(x, axis=-1, keepdims=True) * inv_d
    xc = x - mean
    var = jnp.sum(xc * xc, axis=-1, keepdims=True) * inv_d      # unbiased=False
    inv = jax.lax.rsqrt(var + jnp.float32(eps))                  # EUP slot
    o_ref[...] = (gamma_ref[...] * (xc * inv) + beta_ref[...]).astype(o_ref.dtype)


def _ln_kernel_segmented(x_ref, gamma_ref, beta_ref, seg_ref, o_ref, *, eps, inv_d):
    """Lane-dense path for small D: g = 128 // D logical rows per 128-lane group.

    Per-segment sums (broadcast back to every lane of their segment) are
    computed with a block-diagonal ones matmul on the otherwise-idle MXU,
    avoiding relayout-triggering in-kernel reshapes.  HIGHEST precision keeps
    the f32 accuracy of the reduction.
    """
    x = x_ref[...].astype(jnp.float32)
    seg = seg_ref[...]
    inv_d = jnp.float32(inv_d)
    mean = jnp.dot(x, seg, precision=jax.lax.Precision.HIGHEST,
                   preferred_element_type=jnp.float32) * inv_d
    xc = x - mean
    var = jnp.dot(xc * xc, seg, precision=jax.lax.Precision.HIGHEST,
                  preferred_element_type=jnp.float32) * inv_d
    inv = jax.lax.rsqrt(var + jnp.float32(eps))
    o_ref[...] = (gamma_ref[...] * (xc * inv) + beta_ref[...]).astype(o_ref.dtype)


# --------------------------------------------------------------------------- #
# Tiling / VMEM heuristics
# --------------------------------------------------------------------------- #
def _sublane_multiple(dtype):
    # Sub-32-bit dtypes pack along sublanes: 8 rows f32, 16 bf16, 32 int8/fp8.
    return max(8, 32 // jnp.dtype(dtype).itemsize)


def _pick_row_tile(n_rows, width, dtype):
    """Rows per block: ~4 MiB blocks, sublane-aligned, never larger than the array."""
    pack = _sublane_multiple(dtype)
    if n_rows <= pack:
        return int(n_rows)  # block spans the full row extent (allowed by the (8,128) rule)
    bytes_per_row = max(width * jnp.dtype(dtype).itemsize, 1)
    tile = max(_TARGET_BLOCK_BYTES // bytes_per_row, pack)
    # v7x megacore: aim for >= 4 grid steps (>= 2 per TensorCore) so each core
    # keeps input-prefetch / output-writeback overlap and the load stays balanced.
    if n_rows >= 4 * pack:
        tile = min(tile, n_rows // 4)
    # Keep the block within the array (edge raggedness handled by the cdiv grid).
    tile = min(tile, (n_rows // pack) * pack)
    return max(pack, (int(tile) // pack) * pack)


def _vmem_limit_bytes(row_tile, width, dtype):
    """Request only what the pipeline needs (not 75% of physical VMEM)."""
    block = row_tile * width * jnp.dtype(dtype).itemsize
    temps_f32 = 2 * row_tile * width * 4            # upcast x and xc, f32
    resident = 2 * width * 4 + _LANE * _LANE * 4    # gamma/beta + segment matrix
    need = 4 * block + temps_f32 + resident         # 2x double-buffered in + out
    need = int(need * 1.25) + (2 << 20)             # headroom for Mosaic scratch
    return int(min(max(need, 16 << 20), 96 << 20))


# --------------------------------------------------------------------------- #
# Wrapper
# --------------------------------------------------------------------------- #
def layer_norm(x, gamma, beta, eps=1e-5, row_tile=None):
    """x: [N, D]; gamma, beta: [D]. Returns [N, D] layer-normalized over D."""
    N, D = x.shape
    itemsize = jnp.dtype(x.dtype).itemsize

    # Lane-dense packing for small D: pack g = 128 // D logical rows per vreg
    # group.  Only taken when the reshape is a free contiguous view (N % g == 0)
    # and the packed row count keeps full-sublane matmul operands (>= 8 rows).
    g = 1
    if D < _LANE and _LANE % D == 0:
        cand = _LANE // D
        if N % cand == 0 and (N // cand) >= 8:
            g = cand

    if g > 1:
        n_rows, width = N // g, g * D
        x_in = x.reshape(n_rows, width)  # free contiguous reshape (no HBM copy)
        gamma_w = jnp.tile(gamma.astype(jnp.float32), g).reshape(1, width)
        beta_w = jnp.tile(beta.astype(jnp.float32), g).reshape(1, width)
        # Block-diagonal ones: seg[i, j] = 1 iff lanes i, j are in the same D-segment.
        seg_id = jnp.arange(width) // D
        seg = (seg_id[:, None] == seg_id[None, :]).astype(jnp.float32)
        extra_inputs = (seg,)
        extra_specs = (pl.BlockSpec((width, width), lambda i: (0, 0)),)
        kernel = functools.partial(_ln_kernel_segmented, eps=float(eps), inv_d=1.0 / D)
    else:
        n_rows, width = N, D
        x_in = x
        gamma_w = gamma.astype(jnp.float32).reshape(1, D)
        beta_w = beta.astype(jnp.float32).reshape(1, D)
        extra_inputs = ()
        extra_specs = ()
        kernel = functools.partial(_ln_kernel_rowsum, eps=float(eps), inv_d=1.0 / D)

    if row_tile is None:
        row_tile = _pick_row_tile(n_rows, width, x.dtype)
    row_tile = int(row_tile)
    grid = int(pl.cdiv(n_rows, row_tile))  # ragged edge block: OOB reads, masked writes

    out = pl.pallas_call(
        kernel,
        out_shape=jax.ShapeDtypeStruct((n_rows, width), x.dtype),
        grid_spec=pltpu.PrefetchScalarGridSpec(
            num_scalar_prefetch=0,
            grid=(grid,),
            in_specs=[
                pl.BlockSpec((row_tile, width), lambda i: (i, 0)),  # x tile
                pl.BlockSpec((1, width), lambda i: (0, 0)),         # gamma (resident)
                pl.BlockSpec((1, width), lambda i: (0, 0)),         # beta  (resident)
                *extra_specs,                                        # segment matrix (resident)
            ],
            out_specs=pl.BlockSpec((row_tile, width), lambda i: (i, 0)),
        ),
        compiler_params=pltpu.CompilerParams(
            dimension_semantics=("parallel",),
            vmem_limit_bytes=_vmem_limit_bytes(row_tile, width, x.dtype),
        ),
        cost_estimate=pl.CostEstimate(
            flops=8 * N * D,
            transcendentals=N,
            bytes_accessed=2 * N * D * itemsize + 2 * D * 4,
        ),
    )(x_in, gamma_w, beta_w, *extra_inputs)

    return out.reshape(N, D) if g > 1 else out


# --------------------------------------------------------------------------- #
# Reference + self-test
# --------------------------------------------------------------------------- #
def _reference(x, gamma, beta, eps):
    mean = jnp.mean(x, axis=-1, keepdims=True)
    var = jnp.mean((x - mean) ** 2, axis=-1, keepdims=True)
    return gamma * ((x - mean) / jnp.sqrt(var + eps)) + beta


if __name__ == "__main__":
    # TODO(synk): GlobalModelSetting/const config lookup has no Pallas analog;
    # d_model and eps are fixed constants here (matching the module's params).
    d_model = 32
    eps = 1e-5
    gamma = jnp.ones((d_model,), dtype=jnp.float32)   # nn.Parameter(torch.ones(d_model))
    beta = jnp.zeros((d_model,), dtype=jnp.float32)   # nn.Parameter(torch.zeros(d_model))

    # Case 1: batch divisible by the packing group -> lane-dense MXU path, grid=1.
    x1 = jax.random.normal(jax.random.PRNGKey(0), (64, d_model), dtype=jnp.float32)
    o1 = jax.block_until_ready(layer_norm(x1, gamma, beta, eps=eps))
    r1 = _reference(x1, gamma, beta, eps)
    assert o1.shape == x1.shape and o1.dtype == x1.dtype
    assert jnp.allclose(o1, r1, atol=1e-5, rtol=1e-5)

    # Case 2: ragged batch -> generic path, cdiv grid, masked edge block (no pad/slice).
    x2 = jax.random.normal(jax.random.PRNGKey(1), (13, d_model), dtype=jnp.float32)
    o2 = jax.block_until_ready(layer_norm(x2, gamma, beta, eps=eps))
    r2 = _reference(x2, gamma, beta, eps)
    assert o2.shape == x2.shape
    assert jnp.allclose(o2, r2, atol=1e-5, rtol=1e-5)

    # Case 3: larger batch -> lane-dense path with a multi-step grid (pipelining).
    x3 = jax.random.normal(jax.random.PRNGKey(2), (256, d_model), dtype=jnp.float32)
    o3 = jax.block_until_ready(layer_norm(x3, gamma, beta, eps=eps))
    r3 = _reference(x3, gamma, beta, eps)
    assert jnp.allclose(o3, r3, atol=1e-5, rtol=1e-5)

    print("KERNEL_OK")
</pallas_src>

<mosaic_0001>
module attributes {stable_mosaic.version = 11 : i64} {
  func.func @_ln_kernel_segmented(%arg0: i32, %arg1: memref<16x128xf32, #tpu.memory_space<vmem>>, %arg2: memref<1x128xf32, #tpu.memory_space<vmem>>, %arg3: memref<1x128xf32, #tpu.memory_space<vmem>>, %arg4: memref<128x128xf32, #tpu.memory_space<vmem>>, %arg5: memref<16x128xf32, #tpu.memory_space<vmem>>) attributes {dimension_semantics = [#tpu.dimension_semantics<parallel>], iteration_bounds = array<i64: 1>, scalar_prefetch = 0 : i64, scratch_operands = 0 : i64, tpu.core_type = #tpu.core_type<tc>, window_params = [{transform_indices = @transform_0, window_bounds = array<i64: 16, 128>}, {pipeline_mode = #tpu.pipeline_mode<synchronous>, transform_indices = @transform_1, window_bounds = array<i64: 1, 128>}, {pipeline_mode = #tpu.pipeline_mode<synchronous>, transform_indices = @transform_2, window_bounds = array<i64: 1, 128>}, {pipeline_mode = #tpu.pipeline_mode<synchronous>, transform_indices = @transform_3, window_bounds = array<i64: 128, 128>}, {transform_indices = @transform_4, window_bounds = array<i64: 16, 128>}]} {
    %c0 = arith.constant 0 : index
    %c0_0 = arith.constant 0 : index
    %0 = vector.load %arg1[%c0, %c0_0] : memref<16x128xf32, #tpu.memory_space<vmem>>, vector<16x128xf32>
    %c0_1 = arith.constant 0 : index
    %c0_2 = arith.constant 0 : index
    %1 = vector.load %arg4[%c0_1, %c0_2] : memref<128x128xf32, #tpu.memory_space<vmem>>, vector<128x128xf32>
    %cst = arith.constant dense<0.000000e+00> : vector<16x128xf32>
    %2 = tpu.matmul %0, %1, %cst {dimension_numbers = #tpu.dot_dimension_numbers<[1], [0], [0], [1], [0, 0, 1, 1], [], []>, precision = #tpu.contract_precision<fp32>} : vector<16x128xf32>, vector<128x128xf32>, vector<16x128xf32> -> vector<16x128xf32>
    %cst_3 = arith.constant 3.125000e-02 : f32
    %3 = vector.broadcast %cst_3 : f32 to vector<16x128xf32>
    %4 = arith.mulf %2, %3 : vector<16x128xf32>
    %5 = arith.subf %0, %4 : vector<16x128xf32>
    %6 = arith.mulf %5, %5 : vector<16x128xf32>
    %cst_4 = arith.constant dense<0.000000e+00> : vector<16x128xf32>
    %7 = tpu.matmul %6, %1, %cst_4 {dimension_numbers = #tpu.dot_dimension_numbers<[1], [0], [0], [1], [0, 0, 1, 1], [], []>, precision = #tpu.contract_precision<fp32>} : vector<16x128xf32>, vector<128x128xf32>, vector<16x128xf32> -> vector<16x128xf32>
    %cst_5 = arith.constant 3.125000e-02 : f32
    %8 = vector.broadcast %cst_5 : f32 to vector<16x128xf32>
    %9 = arith.mulf %7, %8 : vector<16x128xf32>
    %cst_6 = arith.constant 9.99999974E-6 : f32
    %10 = vector.broadcast %cst_6 : f32 to vector<16x128xf32>
    %11 = arith.addf %9, %10 : vector<16x128xf32>
    %12 = math.rsqrt %11 : vector<16x128xf32>
    %c0_7 = arith.constant 0 : index
    %c0_8 = arith.constant 0 : index
    %13 = vector.load %arg2[%c0_7, %c0_8] : memref<1x128xf32, #tpu.memory_space<vmem>>, vector<1x128xf32>
    %14 = arith.mulf %5, %12 : vector<16x128xf32>
    %15 = vector.broadcast %13 : vector<1x128xf32> to vector<16x128xf32>
    %16 = arith.mulf %15, %14 : vector<16x128xf32>
    %c0_9 = arith.constant 0 : index
    %c0_10 = arith.constant 0 : index
    %17 = vector.load %arg3[%c0_9, %c0_10] : memref<1x128xf32, #tpu.memory_space<vmem>>, vector<1x128xf32>
    %18 = vector.broadcast %17 : vector<1x128xf32> to vector<16x128xf32>
    %19 = arith.addf %16, %18 : vector<16x128xf32>
    %c0_11 = arith.constant 0 : index
    %c0_12 = arith.constant 0 : index
    %20 = vector.load %arg5[%c0_11, %c0_12] : memref<16x128xf32, #tpu.memory_space<vmem>>, vector<16x128xf32>
    tpu.vector_store %arg5[%c0_11, %c0_12], %19 {strides = array<i32>} : memref<16x128xf32, #tpu.memory_space<vmem>>, vector<16x128xf32>,
    return
  }
  func.func @transform_0(%arg0: i32) -> (i32, i32) {
    %c0_i32 = arith.constant 0 : i32
    %c0_i32_0 = arith.constant 0 : i32
    return %arg0, %c0_i32 : i32, i32
  }
  func.func @transform_1(%arg0: i32) -> (i32, i32) {
    %c0_i32 = arith.constant 0 : i32
    %c0_i32_0 = arith.constant 0 : i32
    %c0_i32_1 = arith.constant 0 : i32
    return %c0_i32, %c0_i32_0 : i32, i32
  }
  func.func @transform_2(%arg0: i32) -> (i32, i32) {
    %c0_i32 = arith.constant 0 : i32
    %c0_i32_0 = arith.constant 0 : i32
    %c0_i32_1 = arith.constant 0 : i32
    return %c0_i32, %c0_i32_0 : i32, i32
  }
  func.func @transform_3(%arg0: i32) -> (i32, i32) {
    %c0_i32 = arith.constant 0 : i32
    %c0_i32_0 = arith.constant 0 : i32
    %c0_i32_1 = arith.constant 0 : i32
    return %c0_i32, %c0_i32_0 : i32, i32
  }
  func.func @transform_4(%arg0: i32) -> (i32, i32) {
    %c0_i32 = arith.constant 0 : i32
    %c0_i32_0 = arith.constant 0 : i32
    return %arg0, %c0_i32 : i32, i32
  }
}

</mosaic_0001>

<llo_original>
// kernel: tpu_custom_call.1
$region0: #{tpu_custom_call.1}
  #allocation0 [shape = 'u32[]', space=smem, size = 0x4, offset = 0x4, fixed_abs, tag = 'smem constant byte address 0x4 - core index']
  #allocation1 [shape = 'u32[144,128]{1,0:T(1,128)}', space=vmem, size = 0x12000, scoped, tag = 'internal scratch']
  %s0 = inlined_call_operand.hbm [shape: f32[16,128], index: 0, kind: input, shape index: {}]
  %s1 = inlined_call_operand.vmem [shape: f32[1,128], index: 1, kind: input, shape index: {}]
  %s2 = inlined_call_operand.vmem [shape: f32[1,128], index: 2, kind: input, shape index: {}]
  %s3 = inlined_call_operand.hbm [shape: f32[128,128], index: 3, kind: input, shape index: {}]
  %s4 = inlined_call_operand.hbm [shape: f32[16,128], index: 4, kind: output, shape index: {}]
  %s5 = sld [smem:[#allocation0]]
  $region34: #{tpu_custom_call.1} parent=0
    _
  %s7 = ssub.s32 1, %s5
  %s8 = scalar_select 0, %s7, %s5
  $region1: #{tpu_custom_call.1} parent=0
    #allocation2 [shape = 'u8[8192]{0}', space=vmem, size = 0x2000, scoped, tag = 'input window, operand 0, single buffered']
    #allocation3 [shape = 's32[1]{0}', space=sflag, size = 0x4, scoped, tag = 'scoped memory for tpu_custom_call.1']
    #allocation4 [shape = 's32[1]{0}', space=sflag, size = 0x4, scoped, tag = 'scoped memory for tpu_custom_call.1']
    #allocation5 [shape = 'u8[65536]{0}', space=vmem, size = 0x10000, scoped, tag = 'input window, operand 3, single buffered']
    #allocation6 [shape = 's32[1]{0}', space=sflag, size = 0x4, scoped, tag = 'scoped memory for tpu_custom_call.1']
    #allocation7 [shape = 'u8[8192]{0}', space=vmem, size = 0x2000, scoped, tag = 'output window, operand 0, single buffered']
    %9 = vsyncpa [#allocation3], 0
    %10 = vsyncpa [#allocation6], 0
    %11 = vsyncpa [#allocation4], 0
    // Predicated region
    $region2: #{tpu_custom_call.1} parent=1 // pred_check
      _
    $region3: #{tpu_custom_call.1} parent=1 // pred_check_branch
      %13 = sbr.rel (0) target = $region5
    $region4: #{tpu_custom_call.1} parent=1 // pred_region
      %s15 = ssub.s32 256, 256
      %16 = vsyncadd [#allocation3], %s15
      %s17 = sshll.u32 [#allocation2], 4
      %s18 = int_to_ptr.vmem [resolvable:$true] %s17
      %23 = dma.hbm_to_vmem [thread:$0]  %s0, 256, %s18, [#allocation3], 128, 128, 8
    $region5: #{tpu_custom_call.1} parent=1 // pred_fallthru
      _
    // Predicated region
    $region6: #{tpu_custom_call.1} parent=1 // pred_check
      _
    $region7: #{tpu_custom_call.1} parent=1 // pred_check_branch
      %25 = sbr.rel (0) target = $region9
    $region8: #{tpu_custom_call.1} parent=1 // pred_region
      _
    $region9: #{tpu_custom_call.1} parent=1 // pred_fallthru
      _
    // Predicated region
    $region10: #{tpu_custom_call.1} parent=1 // pred_check
      _
    $region11: #{tpu_custom_call.1} parent=1 // pred_check_branch
      %27 = sbr.rel (0) target = $region13
    $region12: #{tpu_custom_call.1} parent=1 // pred_region
      _
    $region13: #{tpu_custom_call.1} parent=1 // pred_fallthru
      _
    // Predicated region
    $region14: #{tpu_custom_call.1} parent=1 // pred_check
      _
    $region15: #{tpu_custom_call.1} parent=1 // pred_check_branch
      %29 = sbr.rel (0) target = $region17
    $region16: #{tpu_custom_call.1} parent=1 // pred_region
      %s31 = ssub.s32 2048, 2048
      %32 = vsyncadd [#allocation6], %s31
      %s33 = sshll.u32 [#allocation5], 4
      %s34 = int_to_ptr.vmem [resolvable:$true] %s33
      %39 = dma.hbm_to_vmem [thread:$0]  %s3, 2048, %s34, [#allocation6], 128, 128, 8
    $region17: #{tpu_custom_call.1} parent=1 // pred_fallthru
      _
    // Predicated region
    $region18: #{tpu_custom_call.1} parent=1 // pred_check
      _
    $region19: #{tpu_custom_call.1} parent=1 // pred_check_branch
      %41 = sbr.rel (0) target = $region21
    $region20: #{tpu_custom_call.1} parent=1 // pred_region
      %42 = dma.done [#allocation3], 256
    $region21: #{tpu_custom_call.1} parent=1 // pred_fallthru
      _
    // Predicated region
    $region22: #{tpu_custom_call.1} parent=1 // pred_check
      _
    $region23: #{tpu_custom_call.1} parent=1 // pred_check_branch
      %44 = sbr.rel (0) target = $region25
    $region24: #{tpu_custom_call.1} parent=1 // pred_region
      %45 = dma.done [#allocation6], 2048
    $region25: #{tpu_custom_call.1} parent=1 // pred_fallthru
      _
    %v46 = vld [vmem:[#allocation2] sm:$0xff]
    %v47 = vld [vmem:[#allocation2 + $0x8] sm:$0xff]
    %v48 = vld [vmem:[#allocation5] sm:$0xff]
    %v49 = vld [vmem:[#allocation5 + $0x8] sm:$0xff]
    %v50 = vld [vmem:[#allocation5 + $0x10] sm:$0xff]
    %v51 = vld [vmem:[#allocation5 + $0x18] sm:$0xff]
    %v52 = vld [vmem:[#allocation5 + $0x20] sm:$0xff]
    %v53 = vld [vmem:[#allocation5 + $0x28] sm:$0xff]
    %v54 = vld [vmem:[#allocation5 + $0x30] sm:$0xff]
    %v55 = vld [vmem:[#allocation5 + $0x38] sm:$0xff]
    %v56 = vld [vmem:[#allocation5 + $0x40] sm:$0xff]
    %v57 = vld [vmem:[#allocation5 + $0x48] sm:$0xff]
    %v58 = vld [vmem:[#allocation5 + $0x50] sm:$0xff]
    %v59 = vld [vmem:[#allocation5 + $0x58] sm:$0xff]
    %v60 = vld [vmem:[#allocation5 + $0x60] sm:$0xff]
    %v61 = vld [vmem:[#allocation5 + $0x68] sm:$0xff]
    %v62 = vld [vmem:[#allocation5 + $0x70] sm:$0xff]
    %v63 = vld [vmem:[#allocation5 + $0x78] sm:$0xff]
    %64 = vmatprep.subr.mxu0 0.0
    %v65 = vand.u32 %v48, 4294901760
    %66 = vmatpush1.msra.mxu0 %v65
    %67 = vmatprep.subr.mxu0 0.0
    %v68 = vand.u32 %v49, 4294901760
    %69 = vmatpush1.msra.mxu0 %v68
    %70 = vmatprep.subr.mxu0 0.0
    %v71 = vand.u32 %v50, 4294901760
    %72 = vmatpush1.msra.mxu0 %v71
    %73 = vmatprep.subr.mxu0 0.0
    %v74 = vand.u32 %v51, 4294901760
    %75 = vmatpush1.msra.mxu0 %v74
    %76 = vmatprep.subr.mxu0 0.0
    %v77 = vand.u32 %v52, 4294901760
    %78 = vmatpush1.msra.mxu0 %v77
    %79 = vmatprep.subr.mxu0 0.0
    %v80 = vand.u32 %v53, 4294901760
    %81 = vmatpush1.msra.mxu0 %v80
    %82 = vmatprep.subr.mxu0 0.0
    %v83 = vand.u32 %v54, 4294901760
    %84 = vmatpush1.msra.mxu0 %v83
    %85 = vmatprep.subr.mxu0 0.0
    %v86 = vand.u32 %v55, 4294901760
    %87 = vmatpush1.msra.mxu0 %v86
    %88 = vmatprep.subr.mxu0 0.0
    %v89 = vand.u32 %v56, 4294901760
    %90 = vmatpush1.msra.mxu0 %v89
    %91 = vmatprep.subr.mxu0 0.0
    %v92 = vand.u32 %v57, 4294901760
    %93 = vmatpush1.msra.mxu0 %v92
    %94 = vmatprep.subr.mxu0 0.0
    %v95 = vand.u32 %v58, 4294901760
    %96 = vmatpush1.msra.mxu0 %v95
    %97 = vmatprep.subr.mxu0 0.0
    %v98 = vand.u32 %v59, 4294901760
    %99 = vmatpush1.msra.mxu0 %v98
    %100 = vmatprep.subr.mxu0 0.0
    %v101 = vand.u32 %v60, 4294901760
    %102 = vmatpush1.msra.mxu0 %v101
    %103 = vmatprep.subr.mxu0 0.0
    %v104 = vand.u32 %v61, 4294901760
    %105 = vmatpush1.msra.mxu0 %v104
    %106 = vmatprep.subr.mxu0 0.0
    %v107 = vand.u32 %v62, 4294901760
    %108 = vmatpush1.msra.mxu0 %v107
    %109 = vmatprep.subr.mxu0 0.0
    %v110 = vand.u32 %v63, 4294901760
    %111 = vmatpush1.msra.mxu0 %v110
    %112 = vmatprep.subr.mxu0 0.0
    %113 = vmatpush1.msra.mxu0 0.0
    %114 = vmatprep.subr.mxu0 0.0
    %115 = vmatpush1.msra.mxu0 0.0
    %116 = vmatprep.subr.mxu0 0.0
    %117 = vmatpush1.msra.mxu0 0.0
    %118 = vmatprep.subr.mxu0 0.0
    %119 = vmatpush1.msra.mxu0 0.0
    %120 = vmatprep.subr.mxu0 0.0
    %121 = vmatpush1.msra.mxu0 0.0
    %122 = vmatprep.subr.mxu0 0.0
    %123 = vmatpush1.msra.mxu0 0.0
    %124 = vmatprep.subr.mxu0 0.0
    %125 = vmatpush1.msra.mxu0 0.0
    %126 = vmatprep.subr.mxu0 0.0
    %127 = vmatpush1.msra.mxu0 0.0
    %128 = vmatprep.subr.mxu0 0.0
    %129 = vmatpush1.msra.mxu0 0.0
    %130 = vmatprep.subr.mxu0 0.0
    %131 = vmatpush1.msra.mxu0 0.0
    %132 = vmatprep.subr.mxu0 0.0
    %133 = vmatpush1.msra.mxu0 0.0
    %134 = vmatprep.subr.mxu0 0.0
    %135 = vmatpush1.msra.mxu0 0.0
    %136 = vmatprep.subr.mxu0 0.0
    %137 = vmatpush1.msra.mxu0 0.0
    %138 = vmatprep.subr.mxu0 0.0
    %139 = vmatpush1.msra.mxu0 0.0
    %140 = vmatprep.subr.mxu0 0.0
    %141 = vmatpush1.msra.mxu0 0.0
    %142 = vmatprep.subr.mxu0 0.0
    %143 = vmatpush1.msra.mxu0 0.0
    %144 = vmatprep.mubr.f32.mxu0 0.0
    %v145 = vand.u32 %v46, 4294901760
    %v146 = vsub.f32 %v46, %v145
    %v147 = vand.u32 %v146, 4294901760
    %v148 = vsub.f32 %v146, %v147
    %v149 = vand.u32 %v148, 4294901760
    %150 = vmatmul.mubr.f32.gmra.mrb[0].mxu0 %v149
    %v151 = vpop.f32.mrb[0].mxu0
    %v152 = vadd.f32 0.0, %v151
    %v153 = vpop.f32.mrb[0].mxu0
    %154 = vmatprep.mubr.f32.mxu0 0.0
    %v155 = vand.u32 %v47, 4294901760
    %v156 = vsub.f32 %v47, %v155
    %v157 = vand.u32 %v156, 4294901760
    %v158 = vsub.f32 %v156, %v157
    %v159 = vand.u32 %v158, 4294901760
    %160 = vmatmul.mubr.f32.gmra.mrb[0].mxu0 %v159
    %v161 = vpop.f32.mrb[0].mxu0
    %v162 = vadd.f32 0.0, %v161
    %v163 = vpop.f32.mrb[0].mxu0
    %164 = vdwg.mxu0
    %165 = vmatprep.subr.mxu0 0.0
    %v166 = vand.u32 %v48, 4294901760
    %v167 = vsub.f32 %v48, %v166
    %v168 = vand.u32 %v167, 4294901760
    %v169 = vsub.f32 %v167, %v168
    %v170 = vand.u32 %v169, 4294901760
    %171 = vmatpush1.msra.mxu0 %v170
    %172 = vmatprep.subr.mxu0 0.0
    %v173 = vand.u32 %v49, 4294901760
    %v174 = vsub.f32 %v49, %v173
    %v175 = vand.u32 %v174, 4294901760
    %v176 = vsub.f32 %v174, %v175
    %v177 = vand.u32 %v176, 4294901760
    %178 = vmatpush1.msra.mxu0 %v177
    %179 = vmatprep.subr.mxu0 0.0
    %v180 = vand.u32 %v50, 4294901760
    %v181 = vsub.f32 %v50, %v180
    %v182 = vand.u32 %v181, 4294901760
    %v183 = vsub.f32 %v181, %v182
    %v184 = vand.u32 %v183, 4294901760
    %185 = vmatpush1.msra.mxu0 %v184
    %186 = vmatprep.subr.mxu0 0.0
    %v187 = vand.u32 %v51, 4294901760
    %v188 = vsub.f32 %v51, %v187
    %v189 = vand.u32 %v188, 4294901760
    %v190 = vsub.f32 %v188, %v189
    %v191 = vand.u32 %v190, 4294901760
    %192 = vmatpush1.msra.mxu0 %v191
    %193 = vmatprep.subr.mxu0 0.0
    %v194 = vand.u32 %v52, 4294901760
    %v195 = vsub.f32 %v52, %v194
    %v196 = vand.u32 %v195, 4294901760
    %v197 = vsub.f32 %v195, %v196
    %v198 = vand.u32 %v197, 4294901760
    %199 = vmatpush1.msra.mxu0 %v198
    %200 = vmatprep.subr.mxu0 0.0
    %v201 = vand.u32 %v53, 4294901760
    %v202 = vsub.f32 %v53, %v201
    %v203 = vand.u32 %v202, 4294901760
    %v204 = vsub.f32 %v202, %v203
    %v205 = vand.u32 %v204, 4294901760
    %206 = vmatpush1.msra.mxu0 %v205
    %207 = vmatprep.subr.mxu0 0.0
    %v208 = vand.u32 %v54, 4294901760
    %v209 = vsub.f32 %v54, %v208
    %v210 = vand.u32 %v209, 4294901760
    %v211 = vsub.f32 %v209, %v210
    %v212 = vand.u32 %v211, 4294901760
    %213 = vmatpush1.msra.mxu0 %v212
    %214 = vmatprep.subr.mxu0 0.0
    %v215 = vand.u32 %v55, 4294901760
    %v216 = vsub.f32 %v55, %v215
    %v217 = vand.u32 %v216, 4294901760
    %v218 = vsub.f32 %v216, %v217
    %v219 = vand.u32 %v218, 4294901760
    %220 = vmatpush1.msra.mxu0 %v219
    %221 = vmatprep.subr.mxu0 0.0
    %v222 = vand.u32 %v56, 4294901760
    %v223 = vsub.f32 %v56, %v222
    %v224 = vand.u32 %v223, 4294901760
    %v225 = vsub.f32 %v223, %v224
    %v226 = vand.u32 %v225, 4294901760
    %227 = vmatpush1.msra.mxu0 %v226
    %228 = vmatprep.subr.mxu0 0.0
    %v229 = vand.u32 %v57, 4294901760
    %v230 = vsub.f32 %v57, %v229
    %v231 = vand.u32 %v230, 4294901760
    %v232 = vsub.f32 %v230, %v231
    %v233 = vand.u32 %v232, 4294901760
    %234 = vmatpush1.msra.mxu0 %v233
    %235 = vmatprep.subr.mxu0 0.0
    %v236 = vand.u32 %v58, 4294901760
    %v237 = vsub.f32 %v58, %v236
    %v238 = vand.u32 %v237, 4294901760
    %v239 = vsub.f32 %v237, %v238
    %v240 = vand.u32 %v239, 4294901760
    %241 = vmatpush1.msra.mxu0 %v240
    %242 = vmatprep.subr.mxu0 0.0
    %v243 = vand.u32 %v59, 4294901760
    %v244 = vsub.f32 %v59, %v243
    %v245 = vand.u32 %v244, 4294901760
    %v246 = vsub.f32 %v244, %v245
    %v247 = vand.u32 %v246, 4294901760
    %248 = vmatpush1.msra.mxu0 %v247
    %249 = vmatprep.subr.mxu0 0.0
    %v250 = vand.u32 %v60, 4294901760
    %v251 = vsub.f32 %v60, %v250
    %v252 = vand.u32 %v251, 4294901760
    %v253 = vsub.f32 %v251, %v252
    %v254 = vand.u32 %v253, 4294901760
    %255 = vmatpush1.msra.mxu0 %v254
    %256 = vmatprep.subr.mxu0 0.0
    %v257 = vand.u32 %v61, 4294901760
    %v258 = vsub.f32 %v61, %v257
    %v259 = vand.u32 %v258, 4294901760
    %v260 = vsub.f32 %v258, %v259
    %v261 = vand.u32 %v260, 4294901760
    %262 = vmatpush1.msra.mxu0 %v261
    %263 = vmatprep.subr.mxu0 0.0
    %v264 = vand.u32 %v62, 4294901760
    %v265 = vsub.f32 %v62, %v264
    %v266 = vand.u32 %v265, 4294901760
    %v267 = vsub.f32 %v265, %v266
    %v268 = vand.u32 %v267, 4294901760
    %269 = vmatpush1.msra.mxu0 %v268
    %270 = vmatprep.subr.mxu0 0.0
    %v271 = vand.u32 %v63, 4294901760
    %v272 = vsub.f32 %v63, %v271
    %v273 = vand.u32 %v272, 4294901760
    %v274 = vsub.f32 %v272, %v273
    %v275 = vand.u32 %v274, 4294901760
    %276 = vmatpush1.msra.mxu0 %v275
    %277 = vmatprep.subr.mxu0 0.0
    %278 = vmatpush1.msra.mxu0 0.0
    %279 = vmatprep.subr.mxu0 0.0
    %280 = vmatpush1.msra.mxu0 0.0
    %281 = vmatprep.subr.mxu0 0.0
    %282 = vmatpush1.msra.mxu0 0.0
    %283 = vmatprep.subr.mxu0 0.0
    %284 = vmatpush1.msra.mxu0 0.0
    %285 = vmatprep.subr.mxu0 0.0
    %286 = vmatpush1.msra.mxu0 0.0
    %287 = vmatprep.subr.mxu0 0.0
    %288 = vmatpush1.msra.mxu0 0.0
    %289 = vmatprep.subr.mxu0 0.0
    %290 = vmatpush1.msra.mxu0 0.0
    %291 = vmatprep.subr.mxu0 0.0
    %292 = vmatpush1.msra.mxu0 0.0
    %293 = vmatprep.subr.mxu0 0.0
    %294 = vmatpush1.msra.mxu0 0.0
    %295 = vmatprep.subr.mxu0 0.0
    %296 = vmatpush1.msra.mxu0 0.0
    %297 = vmatprep.subr.mxu0 0.0
    %298 = vmatpush1.msra.mxu0 0.0
    %299 = vmatprep.subr.mxu0 0.0
    %300 = vmatpush1.msra.mxu0 0.0
    %301 = vmatprep.subr.mxu0 0.0
    %302 = vmatpush1.msra.mxu0 0.0
    %303 = vmatprep.subr.mxu0 0.0
    %304 = vmatpush1.msra.mxu0 0.0
    %305 = vmatprep.subr.mxu0 0.0
    %306 = vmatpush1.msra.mxu0 0.0
    %307 = vmatprep.subr.mxu0 0.0
    %308 = vmatpush1.msra.mxu0 0.0
    %309 = vmatprep.mubr.f32.mxu0 0.0
    %v310 = vand.u32 %v46, 4294901760
    %311 = vmatmul.mubr.f32.gmra.mrb[0].mxu0 %v310
    %v312 = vpop.f32.mrb[0].mxu0
    %v313 = vadd.f32 %v152, %v312
    %v314 = vpop.f32.mrb[0].mxu0
    %315 = vmatprep.mubr.f32.mxu0 0.0
    %v316 = vand.u32 %v47, 4294901760
    %317 = vmatmul.mubr.f32.gmra.mrb[0].mxu0 %v316
    %v318 = vpop.f32.mrb[0].mxu0
    %v319 = vadd.f32 %v162, %v318
    %v320 = vpop.f32.mrb[0].mxu0
    %321 = vdwg.mxu0
    %322 = vmatprep.subr.mxu0 0.0
    %v323 = vand.u32 %v48, 4294901760
    %v324 = vsub.f32 %v48, %v323
    %325 = vmatpush1.msra.mxu0 %v324
    %326 = vmatprep.subr.mxu0 0.0
    %v327 = vand.u32 %v49, 4294901760
    %v328 = vsub.f32 %v49, %v327
    %329 = vmatpush1.msra.mxu0 %v328
    %330 = vmatprep.subr.mxu0 0.0
    %v331 = vand.u32 %v50, 4294901760
    %v332 = vsub.f32 %v50, %v331
    %333 = vmatpush1.msra.mxu0 %v332
    %334 = vmatprep.subr.mxu0 0.0
    %v335 = vand.u32 %v51, 4294901760
    %v336 = vsub.f32 %v51, %v335
    %337 = vmatpush1.msra.mxu0 %v336
    %338 = vmatprep.subr.mxu0 0.0
    %v339 = vand.u32 %v52, 4294901760
    %v340 = vsub.f32 %v52, %v339
    %341 = vmatpush1.msra.mxu0 %v340
    %342 = vmatprep.subr.mxu0 0.0
    %v343 = vand.u32 %v53, 4294901760
    %v344 = vsub.f32 %v53, %v343
    %345 = vmatpush1.msra.mxu0 %v344
    %346 = vmatprep.subr.mxu0 0.0
    %v347 = vand.u32 %v54, 4294901760
    %v348 = vsub.f32 %v54, %v347
    %349 = vmatpush1.msra.mxu0 %v348
    %350 = vmatprep.subr.mxu0 0.0
    %v351 = vand.u32 %v55, 4294901760
    %v352 = vsub.f32 %v55, %v351
    %353 = vmatpush1.msra.mxu0 %v352
    %354 = vmatprep.subr.mxu0 0.0
    %v355 = vand.u32 %v56, 4294901760
    %v356 = vsub.f32 %v56, %v355
    %357 = vmatpush1.msra.mxu0 %v356
    %358 = vmatprep.subr.mxu0 0.0
    %v359 = vand.u32 %v57, 4294901760
    %v360 = vsub.f32 %v57, %v359
    %361 = vmatpush1.msra.mxu0 %v360
    %362 = vmatprep.subr.mxu0 0.0
    %v363 = vand.u32 %v58, 4294901760
    %v364 = vsub.f32 %v58, %v363
    %365 = vmatpush1.msra.mxu0 %v364
    %366 = vmatprep.subr.mxu0 0.0
    %v367 = vand.u32 %v59, 4294901760
    %v368 = vsub.f32 %v59, %v367
    %369 = vmatpush1.msra.mxu0 %v368
    %370 = vmatprep.subr.mxu0 0.0
    %v371 = vand.u32 %v60, 4294901760
    %v372 = vsub.f32 %v60, %v371
    %373 = vmatpush1.msra.mxu0 %v372
    %374 = vmatprep.subr.mxu0 0.0
    %v375 = vand.u32 %v61, 4294901760
    %v376 = vsub.f32 %v61, %v375
    %377 = vmatpush1.msra.mxu0 %v376
    %378 = vmatprep.subr.mxu0 0.0
    %v379 = vand.u32 %v62, 4294901760
    %v380 = vsub.f32 %v62, %v379
    %381 = vmatpush1.msra.mxu0 %v380
    %382 = vmatprep.subr.mxu0 0.0
    %v383 = vand.u32 %v63, 4294901760
    %v384 = vsub.f32 %v63, %v383
    %385 = vmatpush1.msra.mxu0 %v384
    %386 = vmatprep.subr.mxu0 0.0
    %387 = vmatpush1.msra.mxu0 0.0
    %388 = vmatprep.subr.mxu0 0.0
    %389 = vmatpush1.msra.mxu0 0.0
    %390 = vmatprep.subr.mxu0 0.0
    %391 = vmatpush1.msra.mxu0 0.0
    %392 = vmatprep.subr.mxu0 0.0
    %393 = vmatpush1.msra.mxu0 0.0
    %394 = vmatprep.subr.mxu0 0.0
    %395 = vmatpush1.msra.mxu0 0.0
    %396 = vmatprep.subr.mxu0 0.0
    %397 = vmatpush1.msra.mxu0 0.0
    %398 = vmatprep.subr.mxu0 0.0
    %399 = vmatpush1.msra.mxu0 0.0
    %400 = vmatprep.subr.mxu0 0.0
    %401 = vmatpush1.msra.mxu0 0.0
    %402 = vmatprep.subr.mxu0 0.0
    %403 = vmatpush1.msra.mxu0 0.0
    %404 = vmatprep.subr.mxu0 0.0
    %405 = vmatpush1.msra.mxu0 0.0
    %406 = vmatprep.subr.mxu0 0.0
    %407 = vmatpush1.msra.mxu0 0.0
    %408 = vmatprep.subr.mxu0 0.0
    %409 = vmatpush1.msra.mxu0 0.0
    %410 = vmatprep.subr.mxu0 0.0
    %411 = vmatpush1.msra.mxu0 0.0
    %412 = vmatprep.subr.mxu0 0.0
    %413 = vmatpush1.msra.mxu0 0.0
    %414 = vmatprep.subr.mxu0 0.0
    %415 = vmatpush1.msra.mxu0 0.0
    %416 = vmatprep.subr.mxu0 0.0
    %417 = vmatpush1.msra.mxu0 0.0
    %418 = vmatprep.mubr.f32.mxu0 0.0
    %v419 = vand.u32 %v46, 4294901760
    %v420 = vsub.f32 %v46, %v419
    %421 = vmatmul.mubr.f32.gmra.mrb[0].mxu0 %v420
    %v422 = vpop.f32.mrb[0].mxu0
    %v423 = vadd.f32 %v313, %v422
    %v424 = vpop.f32.mrb[0].mxu0
    %425 = vmatprep.mubr.f32.mxu0 0.0
    %v426 = vand.u32 %v47, 4294901760
    %v427 = vsub.f32 %v47, %v426
    %428 = vmatmul.mubr.f32.gmra.mrb[0].mxu0 %v427
    %v429 = vpop.f32.mrb[0].mxu0
    %v430 = vadd.f32 %v319, %v429
    %v431 = vpop.f32.mrb[0].mxu0
    %432 = vdwg.mxu0
    %433 = vmatprep.subr.mxu0 0.0
    %v434 = vand.u32 %v48, 4294901760
    %435 = vmatpush1.msra.mxu0 %v434
    %436 = vmatprep.subr.mxu0 0.0
    %v437 = vand.u32 %v49, 4294901760
    %438 = vmatpush1.msra.mxu0 %v437
    %439 = vmatprep.subr.mxu0 0.0
    %v440 = vand.u32 %v50, 4294901760
    %441 = vmatpush1.msra.mxu0 %v440
    %442 = vmatprep.subr.mxu0 0.0
    %v443 = vand.u32 %v51, 4294901760
    %444 = vmatpush1.msra.mxu0 %v443
    %445 = vmatprep.subr.mxu0 0.0
    %v446 = vand.u32 %v52, 4294901760
    %447 = vmatpush1.msra.mxu0 %v446
    %448 = vmatprep.subr.mxu0 0.0
    %v449 = vand.u32 %v53, 4294901760
    %450 = vmatpush1.msra.mxu0 %v449
    %451 = vmatprep.subr.mxu0 0.0
    %v452 = vand.u32 %v54, 4294901760
    %453 = vmatpush1.msra.mxu0 %v452
    %454 = vmatprep.subr.mxu0 0.0
    %v455 = vand.u32 %v55, 4294901760
    %456 = vmatpush1.msra.mxu0 %v455
    %457 = vmatprep.subr.mxu0 0.0
    %v458 = vand.u32 %v56, 4294901760
    %459 = vmatpush1.msra.mxu0 %v458
    %460 = vmatprep.subr.mxu0 0.0
    %v461 = vand.u32 %v57, 4294901760
    %462 = vmatpush1.msra.mxu0 %v461
    %463 = vmatprep.subr.mxu0 0.0
    %v464 = vand.u32 %v58, 4294901760
    %465 = vmatpush1.msra.mxu0 %v464
    %466 = vmatprep.subr.mxu0 0.0
    %v467 = vand.u32 %v59, 4294901760
    %468 = vmatpush1.msra.mxu0 %v467
    %469 = vmatprep.subr.mxu0 0.0
    %v470 = vand.u32 %v60, 4294901760
    %471 = vmatpush1.msra.mxu0 %v470
    %472 = vmatprep.subr.mxu0 0.0
    %v473 = vand.u32 %v61, 4294901760
    %474 = vmatpush1.msra.mxu0 %v473
    %475 = vmatprep.subr.mxu0 0.0
    %v476 = vand.u32 %v62, 4294901760
    %477 = vmatpush1.msra.mxu0 %v476
    %478 = vmatprep.subr.mxu0 0.0
    %v479 = vand.u32 %v63, 4294901760
    %480 = vmatpush1.msra.mxu0 %v479
    %481 = vmatprep.subr.mxu0 0.0
    %482 = vmatpush1.msra.mxu0 0.0
    %483 = vmatprep.subr.mxu0 0.0
    %484 = vmatpush1.msra.mxu0 0.0
    %485 = vmatprep.subr.mxu0 0.0
    %486 = vmatpush1.msra.mxu0 0.0
    %487 = vmatprep.subr.mxu0 0.0
    %488 = vmatpush1.msra.mxu0 0.0
    %489 = vmatprep.subr.mxu0 0.0
    %490 = vmatpush1.msra.mxu0 0.0
    %491 = vmatprep.subr.mxu0 0.0
    %492 = vmatpush1.msra.mxu0 0.0
    %493 = vmatprep.subr.mxu0 0.0
    %494 = vmatpush1.msra.mxu0 0.0
    %495 = vmatprep.subr.mxu0 0.0
    %496 = vmatpush1.msra.mxu0 0.0
    %497 = vmatprep.subr.mxu0 0.0
    %498 = vmatpush1.msra.mxu0 0.0
    %499 = vmatprep.subr.mxu0 0.0
    %500 = vmatpush1.msra.mxu0 0.0
    %501 = vmatprep.subr.mxu0 0.0
    %502 = vmatpush1.msra.mxu0 0.0
    %503 = vmatprep.subr.mxu0 0.0
    %504 = vmatpush1.msra.mxu0 0.0
    %505 = vmatprep.subr.mxu0 0.0
    %506 = vmatpush1.msra.mxu0 0.0
    %507 = vmatprep.subr.mxu0 0.0
    %508 = vmatpush1.msra.mxu0 0.0
    %509 = vmatprep.subr.mxu0 0.0
    %510 = vmatpush1.msra.mxu0 0.0
    %511 = vmatprep.subr.mxu0 0.0
    %512 = vmatpush1.msra.mxu0 0.0
    %513 = vmatprep.mubr.f32.mxu0 0.0
    %v514 = vand.u32 %v46, 4294901760
    %v515 = vsub.f32 %v46, %v514
    %v516 = vand.u32 %v515, 4294901760
    %517 = vmatmul.mubr.f32.gmra.mrb[0].mxu0 %v516
    %v518 = vpop.f32.mrb[0].mxu0
    %v519 = vadd.f32 %v423, %v518
    %v520 = vpop.f32.mrb[0].mxu0
    %521 = vmatprep.mubr.f32.mxu0 0.0
    %v522 = vand.u32 %v47, 4294901760
    %v523 = vsub.f32 %v47, %v522
    %v524 = vand.u32 %v523, 4294901760
    %525 = vmatmul.mubr.f32.gmra.mrb[0].mxu0 %v524
    %v526 = vpop.f32.mrb[0].mxu0
    %v527 = vadd.f32 %v430, %v526
    %v528 = vpop.f32.mrb[0].mxu0
    %529 = vdwg.mxu0
    %530 = vmatprep.subr.mxu0 0.0
    %v531 = vand.u32 %v48, 4294901760
    %v532 = vsub.f32 %v48, %v531
    %v533 = vand.u32 %v532, 4294901760
    %534 = vmatpush1.msra.mxu0 %v533
    %535 = vmatprep.subr.mxu0 0.0
    %v536 = vand.u32 %v49, 4294901760
    %v537 = vsub.f32 %v49, %v536
    %v538 = vand.u32 %v537, 4294901760
    %539 = vmatpush1.msra.mxu0 %v538
    %540 = vmatprep.subr.mxu0 0.0
    %v541 = vand.u32 %v50, 4294901760
    %v542 = vsub.f32 %v50, %v541
    %v543 = vand.u32 %v542, 4294901760
    %544 = vmatpush1.msra.mxu0 %v543
    %545 = vmatprep.subr.mxu0 0.0
    %v546 = vand.u32 %v51, 4294901760
    %v547 = vsub.f32 %v51, %v546
    %v548 = vand.u32 %v547, 4294901760
    %549 = vmatpush1.msra.mxu0 %v548
    %550 = vmatprep.subr.mxu0 0.0
    %v551 = vand.u32 %v52, 4294901760
    %v552 = vsub.f32 %v52, %v551
    %v553 = vand.u32 %v552, 4294901760
    %554 = vmatpush1.msra.mxu0 %v553
    %555 = vmatprep.subr.mxu0 0.0
    %v556 = vand.u32 %v53, 4294901760
    %v557 = vsub.f32 %v53, %v556
    %v558 = vand.u32 %v557, 4294901760
    %559 = vmatpush1.msra.mxu0 %v558
    %560 = vmatprep.subr.mxu0 0.0
    %v561 = vand.u32 %v54, 4294901760
    %v562 = vsub.f32 %v54, %v561
    %v563 = vand.u32 %v562, 4294901760
    %564 = vmatpush1.msra.mxu0 %v563
    %565 = vmatprep.subr.mxu0 0.0
    %v566 = vand.u32 %v55, 4294901760
    %v567 = vsub.f32 %v55, %v566
    %v568 = vand.u32 %v567, 4294901760
    %569 = vmatpush1.msra.mxu0 %v568
    %570 = vmatprep.subr.mxu0 0.0
    %v571 = vand.u32 %v56, 4294901760
    %v572 = vsub.f32 %v56, %v571
    %v573 = vand.u32 %v572, 4294901760
    %574 = vmatpush1.msra.mxu0 %v573
    %575 = vmatprep.subr.mxu0 0.0
    %v576 = vand.u32 %v57, 4294901760
    %v577 = vsub.f32 %v57, %v576
    %v578 = vand.u32 %v577, 4294901760
    %579 = vmatpush1.msra.mxu0 %v578
    %580 = vmatprep.subr.mxu0 0.0
    %v581 = vand.u32 %v58, 4294901760
    %v582 = vsub.f32 %v58, %v581
    %v583 = vand.u32 %v582, 4294901760
    %584 = vmatpush1.msra.mxu0 %v583
    %585 = vmatprep.subr.mxu0 0.0
    %v586 = vand.u32 %v59, 4294901760
    %v587 = vsub.f32 %v59, %v586
    %v588 = vand.u32 %v587, 4294901760
    %589 = vmatpush1.msra.mxu0 %v588
    %590 = vmatprep.subr.mxu0 0.0
    %v591 = vand.u32 %v60, 4294901760
    %v592 = vsub.f32 %v60, %v591
    %v593 = vand.u32 %v592, 4294901760
    %594 = vmatpush1.msra.mxu0 %v593
    %595 = vmatprep.subr.mxu0 0.0
    %v596 = vand.u32 %v61, 4294901760
    %v597 = vsub.f32 %v61, %v596
    %v598 = vand.u32 %v597, 4294901760
    %599 = vmatpush1.msra.mxu0 %v598
    %600 = vmatprep.subr.mxu0 0.0
    %v601 = vand.u32 %v62, 4294901760
    %v602 = vsub.f32 %v62, %v601
    %v603 = vand.u32 %v602, 4294901760
    %604 = vmatpush1.msra.mxu0 %v603
    %605 = vmatprep.subr.mxu0 0.0
    %v606 = vand.u32 %v63, 4294901760
    %v607 = vsub.f32 %v63, %v606
    %v608 = vand.u32 %v607, 4294901760
    %609 = vmatpush1.msra.mxu0 %v608
    %610 = vmatprep.subr.mxu0 0.0
    %611 = vmatpush1.msra.mxu0 0.0
    %612 = vmatprep.subr.mxu0 0.0
    %613 = vmatpush1.msra.mxu0 0.0
    %614 = vmatprep.subr.mxu0 0.0
    %615 = vmatpush1.msra.mxu0 0.0
    %616 = vmatprep.subr.mxu0 0.0
    %617 = vmatpush1.msra.mxu0 0.0
    %618 = vmatprep.subr.mxu0 0.0
    %619 = vmatpush1.msra.mxu0 0.0
    %620 = vmatprep.subr.mxu0 0.0
    %621 = vmatpush1.msra.mxu0 0.0
    %622 = vmatprep.subr.mxu0 0.0
    %623 = vmatpush1.msra.mxu0 0.0
    %624 = vmatprep.subr.mxu0 0.0
    %625 = vmatpush1.msra.mxu0 0.0
    %626 = vmatprep.subr.mxu0 0.0
    %627 = vmatpush1.msra.mxu0 0.0
    %628 = vmatprep.subr.mxu0 0.0
    %629 = vmatpush1.msra.mxu0 0.0
    %630 = vmatprep.subr.mxu0 0.0
    %631 = vmatpush1.msra.mxu0 0.0
    %632 = vmatprep.subr.mxu0 0.0
    %633 = vmatpush1.msra.mxu0 0.0
    %634 = vmatprep.subr.mxu0 0.0
    %635 = vmatpush1.msra.mxu0 0.0
    %636 = vmatprep.subr.mxu0 0.0
    %637 = vmatpush1.msra.mxu0 0.0
    %638 = vmatprep.subr.mxu0 0.0
    %639 = vmatpush1.msra.mxu0 0.0
    %640 = vmatprep.subr.mxu0 0.0
    %641 = vmatpush1.msra.mxu0 0.0
    %642 = vmatprep.mubr.f32.mxu0 0.0
    %v643 = vand.u32 %v46, 4294901760
    %644 = vmatmul.mubr.f32.gmra.mrb[0].mxu0 %v643
    %v645 = vpop.f32.mrb[0].mxu0
    %v646 = vadd.f32 %v519, %v645
    %v647 = vpop.f32.mrb[0].mxu0
    %648 = vmatprep.mubr.f32.mxu0 0.0
    %v649 = vand.u32 %v47, 4294901760
    %650 = vmatmul.mubr.f32.gmra.mrb[0].mxu0 %v649
    %v651 = vpop.f32.mrb[0].mxu0
    %v652 = vadd.f32 %v527, %v651
    %v653 = vpop.f32.mrb[0].mxu0
    %654 = vdwg.mxu0
    %655 = vmatprep.subr.mxu0 0.0
    %v656 = vand.u32 %v48, 4294901760
    %657 = vmatpush1.msra.mxu0 %v656
    %658 = vmatprep.subr.mxu0 0.0
    %v659 = vand.u32 %v49, 4294901760
    %660 = vmatpush1.msra.mxu0 %v659
    %661 = vmatprep.subr.mxu0 0.0
    %v662 = vand.u32 %v50, 4294901760
    %663 = vmatpush1.msra.mxu0 %v662
    %664 = vmatprep.subr.mxu0 0.0
    %v665 = vand.u32 %v51, 4294901760
    %666 = vmatpush1.msra.mxu0 %v665
    %667 = vmatprep.subr.mxu0 0.0
    %v668 = vand.u32 %v52, 4294901760
    %669 = vmatpush1.msra.mxu0 %v668
    %670 = vmatprep.subr.mxu0 0.0
    %v671 = vand.u32 %v53, 4294901760
    %672 = vmatpush1.msra.mxu0 %v671
    %673 = vmatprep.subr.mxu0 0.0
    %v674 = vand.u32 %v54, 4294901760
    %675 = vmatpush1.msra.mxu0 %v674
    %676 = vmatprep.subr.mxu0 0.0
    %v677 = vand.u32 %v55, 4294901760
    %678 = vmatpush1.msra.mxu0 %v677
    %679 = vmatprep.subr.mxu0 0.0
    %v680 = vand.u32 %v56, 4294901760
    %681 = vmatpush1.msra.mxu0 %v680
    %682 = vmatprep.subr.mxu0 0.0
    %v683 = vand.u32 %v57, 4294901760
    %684 = vmatpush1.msra.mxu0 %v683
    %685 = vmatprep.subr.mxu0 0.0
    %v686 = vand.u32 %v58, 4294901760
    %687 = vmatpush1.msra.mxu0 %v686
    %688 = vmatprep.subr.mxu0 0.0
    %v689 = vand.u32 %v59, 4294901760
    %690 = vmatpush1.msra.mxu0 %v689
    %691 = vmatprep.subr.mxu0 0.0
    %v692 = vand.u32 %v60, 4294901760
    %693 = vmatpush1.msra.mxu0 %v692
    %694 = vmatprep.subr.mxu0 0.0
    %v695 = vand.u32 %v61, 4294901760
    %696 = vmatpush1.msra.mxu0 %v695
    %697 = vmatprep.subr.mxu0 0.0
    %v698 = vand.u32 %v62, 4294901760
    %699 = vmatpush1.msra.mxu0 %v698
    %700 = vmatprep.subr.mxu0 0.0
    %v701 = vand.u32 %v63, 4294901760
    %702 = vmatpush1.msra.mxu0 %v701
    %703 = vmatprep.subr.mxu0 0.0
    %704 = vmatpush1.msra.mxu0 0.0
    %705 = vmatprep.subr.mxu0 0.0
    %706 = vmatpush1.msra.mxu0 0.0
    %707 = vmatprep.subr.mxu0 0.0
    %708 = vmatpush1.msra.mxu0 0.0
    %709 = vmatprep.subr.mxu0 0.0
    %710 = vmatpush1.msra.mxu0 0.0
    %711 = vmatprep.subr.mxu0 0.0
    %712 = vmatpush1.msra.mxu0 0.0
    %713 = vmatprep.subr.mxu0 0.0
    %714 = vmatpush1.msra.mxu0 0.0
    %715 = vmatprep.subr.mxu0 0.0
    %716 = vmatpush1.msra.mxu0 0.0
    %717 = vmatprep.subr.mxu0 0.0
    %718 = vmatpush1.msra.mxu0 0.0
    %719 = vmatprep.subr.mxu0 0.0
    %720 = vmatpush1.msra.mxu0 0.0
    %721 = vmatprep.subr.mxu0 0.0
    %722 = vmatpush1.msra.mxu0 0.0
    %723 = vmatprep.subr.mxu0 0.0
    %724 = vmatpush1.msra.mxu0 0.0
    %725 = vmatprep.subr.mxu0 0.0
    %726 = vmatpush1.msra.mxu0 0.0
    %727 = vmatprep.subr.mxu0 0.0
    %728 = vmatpush1.msra.mxu0 0.0
    %729 = vmatprep.subr.mxu0 0.0
    %730 = vmatpush1.msra.mxu0 0.0
    %731 = vmatprep.subr.mxu0 0.0
    %732 = vmatpush1.msra.mxu0 0.0
    %733 = vmatprep.subr.mxu0 0.0
    %734 = vmatpush1.msra.mxu0 0.0
    %735 = vmatprep.mubr.f32.mxu0 0.0
    %v736 = vand.u32 %v46, 4294901760
    %737 = vmatmul.mubr.f32.gmra.mrb[0].mxu0 %v736
    %v738 = vpop.f32.mrb[0].mxu0
    %v739 = vadd.f32 %v646, %v738
    %v740 = vpop.f32.mrb[0].mxu0
    %741 = vmatprep.mubr.f32.mxu0 0.0
    %v742 = vand.u32 %v47, 4294901760
    %743 = vmatmul.mubr.f32.gmra.mrb[0].mxu0 %v742
    %v744 = vpop.f32.mrb[0].mxu0
    %v745 = vadd.f32 %v652, %v744
    %v746 = vpop.f32.mrb[0].mxu0
    %747 = vdwg.mxu0
    %v748 = vmul.f32 %v739, 0.03125
    %v749 = vmul.f32 %v745, 0.03125
    %v750 = vsub.f32 %v46, %v748
    %v751 = vsub.f32 %v47, %v749
    %v752 = vmul.f32 %v750, %v750
    %v753 = vmul.f32 %v751, %v751
    %754 = vmatprep.subr.mxu0 0.0
    %v755 = vand.u32 %v48, 4294901760
    %756 = vmatpush1.msra.mxu0 %v755
    %757 = vmatprep.subr.mxu0 0.0
    %v758 = vand.u32 %v49, 4294901760
    %759 = vmatpush1.msra.mxu0 %v758
    %760 = vmatprep.subr.mxu0 0.0
    %v761 = vand.u32 %v50, 4294901760
    %762 = vmatpush1.msra.mxu0 %v761
    %763 = vmatprep.subr.mxu0 0.0
    %v764 = vand.u32 %v51, 4294901760
    %765 = vmatpush1.msra.mxu0 %v764
    %766 = vmatprep.subr.mxu0 0.0
    %v767 = vand.u32 %v52, 4294901760
    %768 = vmatpush1.msra.mxu0 %v767
    %769 = vmatprep.subr.mxu0 0.0
    %v770 = vand.u32 %v53, 4294901760
    %771 = vmatpush1.msra.mxu0 %v770
    %772 = vmatprep.subr.mxu0 0.0
    %v773 = vand.u32 %v54, 4294901760
    %774 = vmatpush1.msra.mxu0 %v773
    %775 = vmatprep.subr.mxu0 0.0
    %v776 = vand.u32 %v55, 4294901760
    %777 = vmatpush1.msra.mxu0 %v776
    %778 = vmatprep.subr.mxu0 0.0
    %v779 = vand.u32 %v56, 4294901760
    %780 = vmatpush1.msra.mxu0 %v779
    %781 = vmatprep.subr.mxu0 0.0
    %v782 = vand.u32 %v57, 4294901760
    %783 = vmatpush1.msra.mxu0 %v782
    %784 = vmatprep.subr.mxu0 0.0
    %v785 = vand.u32 %v58, 4294901760
    %786 = vmatpush1.msra.mxu0 %v785
    %787 = vmatprep.subr.mxu0 0.0
    %v788 = vand.u32 %v59, 4294901760
    %789 = vmatpush1.msra.mxu0 %v788
    %790 = vmatprep.subr.mxu0 0.0
    %v791 = vand.u32 %v60, 4294901760
    %792 = vmatpush1.msra.mxu0 %v791
    %793 = vmatprep.subr.mxu0 0.0
    %v794 = vand.u32 %v61, 4294901760
    %795 = vmatpush1.msra.mxu0 %v794
    %796 = vmatprep.subr.mxu0 0.0
    %v797 = vand.u32 %v62, 4294901760
    %798 = vmatpush1.msra.mxu0 %v797
    %799 = vmatprep.subr.mxu0 0.0
    %v800 = vand.u32 %v63, 4294901760
    %801 = vmatpush1.msra.mxu0 %v800
    %802 = vmatprep.subr.mxu0 0.0
    %803 = vmatpush1.msra.mxu0 0.0
    %804 = vmatprep.subr.mxu0 0.0
    %805 = vmatpush1.msra.mxu0 0.0
    %806 = vmatprep.subr.mxu0 0.0
    %807 = vmatpush1.msra.mxu0 0.0
    %808 = vmatprep.subr.mxu0 0.0
    %809 = vmatpush1.msra.mxu0 0.0
    %810 = vmatprep.subr.mxu0 0.0
    %811 = vmatpush1.msra.mxu0 0.0
    %812 = vmatprep.subr.mxu0 0.0
    %813 = vmatpush1.msra.mxu0 0.0
    %814 = vmatprep.subr.mxu0 0.0
    %815 = vmatpush1.msra.mxu0 0.0
    %816 = vmatprep.subr.mxu0 0.0
    %817 = vmatpush1.msra.mxu0 0.0
    %818 = vmatprep.subr.mxu0 0.0
    %819 = vmatpush1.msra.mxu0 0.0
    %820 = vmatprep.subr.mxu0 0.0
    %821 = vmatpush1.msra.mxu0 0.0
    %822 = vmatprep.subr.mxu0 0.0
    %823 = vmatpush1.msra.mxu0 0.0
    %824 = vmatprep.subr.mxu0 0.0
    %825 = vmatpush1.msra.mxu0 0.0
    %826 = vmatprep.subr.mxu0 0.0
    %827 = vmatpush1.msra.mxu0 0.0
    %828 = vmatprep.subr.mxu0 0.0
    %829 = vmatpush1.msra.mxu0 0.0
    %830 = vmatprep.subr.mxu0 0.0
    %831 = vmatpush1.msra.mxu0 0.0
    %832 = vmatprep.subr.mxu0 0.0
    %833 = vmatpush1.msra.mxu0 0.0
    %834 = vmatprep.mubr.f32.mxu0 0.0
    %v835 = vand.u32 %v752, 4294901760
    %v836 = vsub.f32 %v752, %v835
    %v837 = vand.u32 %v836, 4294901760
    %v838 = vsub.f32 %v836, %v837
    %v839 = vand.u32 %v838, 4294901760
    %840 = vmatmul.mubr.f32.gmra.mrb[0].mxu0 %v839
    %v841 = vpop.f32.mrb[0].mxu0
    %v842 = vadd.f32 0.0, %v841
    %v843 = vpop.f32.mrb[0].mxu0
    %844 = vmatprep.mubr.f32.mxu0 0.0
    %v845 = vand.u32 %v753, 4294901760
    %v846 = vsub.f32 %v753, %v845
    %v847 = vand.u32 %v846, 4294901760
    %v848 = vsub.f32 %v846, %v847
    %v849 = vand.u32 %v848, 4294901760
    %850 = vmatmul.mubr.f32.gmra.mrb[0].mxu0 %v849
    %v851 = vpop.f32.mrb[0].mxu0
    %v852 = vadd.f32 0.0, %v851
    %v853 = vpop.f32.mrb[0].mxu0
    %854 = vdwg.mxu0
    %855 = vmatprep.subr.mxu0 0.0
    %v856 = vand.u32 %v48, 4294901760
    %v857 = vsub.f32 %v48, %v856
    %v858 = vand.u32 %v857, 4294901760
    %v859 = vsub.f32 %v857, %v858
    %v860 = vand.u32 %v859, 4294901760
    %861 = vmatpush1.msra.mxu0 %v860
    %862 = vmatprep.subr.mxu0 0.0
    %v863 = vand.u32 %v49, 4294901760
    %v864 = vsub.f32 %v49, %v863
    %v865 = vand.u32 %v864, 4294901760
    %v866 = vsub.f32 %v864, %v865
    %v867 = vand.u32 %v866, 4294901760
    %868 = vmatpush1.msra.mxu0 %v867
    %869 = vmatprep.subr.mxu0 0.0
    %v870 = vand.u32 %v50, 4294901760
    %v871 = vsub.f32 %v50, %v870
    %v872 = vand.u32 %v871, 4294901760
    %v873 = vsub.f32 %v871, %v872
    %v874 = vand.u32 %v873, 4294901760
    %875 = vmatpush1.msra.mxu0 %v874
    %876 = vmatprep.subr.mxu0 0.0
    %v877 = vand.u32 %v51, 4294901760
    %v878 = vsub.f32 %v51, %v877
    %v879 = vand.u32 %v878, 4294901760
    %v880 = vsub.f32 %v878, %v879
    %v881 = vand.u32 %v880, 4294901760
    %882 = vmatpush1.msra.mxu0 %v881
    %883 = vmatprep.subr.mxu0 0.0
    %v884 = vand.u32 %v52, 4294901760
    %v885 = vsub.f32 %v52, %v884
    %v886 = vand.u32 %v885, 4294901760
    %v887 = vsub.f32 %v885, %v886
    %v888 = vand.u32 %v887, 4294901760
    %889 = vmatpush1.msra.mxu0 %v888
    %890 = vmatprep.subr.mxu0 0.0
    %v891 = vand.u32 %v53, 4294901760
    %v892 = vsub.f32 %v53, %v891
    %v893 = vand.u32 %v892, 4294901760
    %v894 = vsub.f32 %v892, %v893
    %v895 = vand.u32 %v894, 4294901760
    %896 = vmatpush1.msra.mxu0 %v895
    %897 = vmatprep.subr.mxu0 0.0
    %v898 = vand.u32 %v54, 4294901760
    %v899 = vsub.f32 %v54, %v898
    %v900 = vand.u32 %v899, 4294901760
    %v901 = vsub.f32 %v899, %v900
    %v902 = vand.u32 %v901, 4294901760
    %903 = vmatpush1.msra.mxu0 %v902
    %904 = vmatprep.subr.mxu0 0.0
    %v905 = vand.u32 %v55, 4294901760
    %v906 = vsub.f32 %v55, %v905
    %v907 = vand.u32 %v906, 4294901760
    %v908 = vsub.f32 %v906, %v907
    %v909 = vand.u32 %v908, 4294901760
    %910 = vmatpush1.msra.mxu0 %v909
    %911 = vmatprep.subr.mxu0 0.0
    %v912 = vand.u32 %v56, 4294901760
    %v913 = vsub.f32 %v56, %v912
    %v914 = vand.u32 %v913, 4294901760
    %v915 = vsub.f32 %v913, %v914
    %v916 = vand.u32 %v915, 4294901760
    %917 = vmatpush1.msra.mxu0 %v916
    %918 = vmatprep.subr.mxu0 0.0
    %v919 = vand.u32 %v57, 4294901760
    %v920 = vsub.f32 %v57, %v919
    %v921 = vand.u32 %v920, 4294901760
    %v922 = vsub.f32 %v920, %v921
    %v923 = vand.u32 %v922, 4294901760
    %924 = vmatpush1.msra.mxu0 %v923
    %925 = vmatprep.subr.mxu0 0.0
    %v926 = vand.u32 %v58, 4294901760
    %v927 = vsub.f32 %v58, %v926
    %v928 = vand.u32 %v927, 4294901760
    %v929 = vsub.f32 %v927, %v928
    %v930 = vand.u32 %v929, 4294901760
    %931 = vmatpush1.msra.mxu0 %v930
    %932 = vmatprep.subr.mxu0 0.0
    %v933 = vand.u32 %v59, 4294901760
    %v934 = vsub.f32 %v59, %v933
    %v935 = vand.u32 %v934, 4294901760
    %v936 = vsub.f32 %v934, %v935
    %v937 = vand.u32 %v936, 4294901760
    %938 = vmatpush1.msra.mxu0 %v937
    %939 = vmatprep.subr.mxu0 0.0
    %v940 = vand.u32 %v60, 4294901760
    %v941 = vsub.f32 %v60, %v940
    %v942 = vand.u32 %v941, 4294901760
    %v943 = vsub.f32 %v941, %v942
    %v944 = vand.u32 %v943, 4294901760
    %945 = vmatpush1.msra.mxu0 %v944
    %946 = vmatprep.subr.mxu0 0.0
    %v947 = vand.u32 %v61, 4294901760
    %v948 = vsub.f32 %v61, %v947
    %v949 = vand.u32 %v948, 4294901760
    %v950 = vsub.f32 %v948, %v949
    %v951 = vand.u32 %v950, 4294901760
    %952 = vmatpush1.msra.mxu0 %v951
    %953 = vmatprep.subr.mxu0 0.0
    %v954 = vand.u32 %v62, 4294901760
    %v955 = vsub.f32 %v62, %v954
    %v956 = vand.u32 %v955, 4294901760
    %v957 = vsub.f32 %v955, %v956
    %v958 = vand.u32 %v957, 4294901760
    %959 = vmatpush1.msra.mxu0 %v958
    %960 = vmatprep.subr.mxu0 0.0
    %v961 = vand.u32 %v63, 4294901760
    %v962 = vsub.f32 %v63, %v961
    %v963 = vand.u32 %v962, 4294901760
    %v964 = vsub.f32 %v962, %v963
    %v965 = vand.u32 %v964, 4294901760
    %966 = vmatpush1.msra.mxu0 %v965
    %967 = vmatprep.subr.mxu0 0.0
    %968 = vmatpush1.msra.mxu0 0.0
    %969 = vmatprep.subr.mxu0 0.0
    %970 = vmatpush1.msra.mxu0 0.0
    %971 = vmatprep.subr.mxu0 0.0
    %972 = vmatpush1.msra.mxu0 0.0
    %973 = vmatprep.subr.mxu0 0.0
    %974 = vmatpush1.msra.mxu0 0.0
    %975 = vmatprep.subr.mxu0 0.0
    %976 = vmatpush1.msra.mxu0 0.0
    %977 = vmatprep.subr.mxu0 0.0
    %978 = vmatpush1.msra.mxu0 0.0
    %979 = vmatprep.subr.mxu0 0.0
    %980 = vmatpush1.msra.mxu0 0.0
    %981 = vmatprep.subr.mxu0 0.0
    %982 = vmatpush1.msra.mxu0 0.0
    %983 = vmatprep.subr.mxu0 0.0
    %984 = vmatpush1.msra.mxu0 0.0
    %985 = vmatprep.subr.mxu0 0.0
    %986 = vmatpush1.msra.mxu0 0.0
    %987 = vmatprep.subr.mxu0 0.0
    %988 = vmatpush1.msra.mxu0 0.0
    %989 = vmatprep.subr.mxu0 0.0
    %990 = vmatpush1.msra.mxu0 0.0
    %991 = vmatprep.subr.mxu0 0.0
    %992 = vmatpush1.msra.mxu0 0.0
    %993 = vmatprep.subr.mxu0 0.0
    %994 = vmatpush1.msra.mxu0 0.0
    %995 = vmatprep.subr.mxu0 0.0
    %996 = vmatpush1.msra.mxu0 0.0
    %997 = vmatprep.subr.mxu0 0.0
    %998 = vmatpush1.msra.mxu0 0.0
    %999 = vmatprep.mubr.f32.mxu0 0.0
    %v1000 = vand.u32 %v752, 4294901760
    %1001 = vmatmul.mubr.f32.gmra.mrb[0].mxu0 %v1000
    %v1002 = vpop.f32.mrb[0].mxu0
    %v1003 = vadd.f32 %v842, %v1002
    %v1004 = vpop.f32.mrb[0].mxu0
    %1005 = vmatprep.mubr.f32.mxu0 0.0
    %v1006 = vand.u32 %v753, 4294901760
    %1007 = vmatmul.mubr.f32.gmra.mrb[0].mxu0 %v1006
    %v1008 = vpop.f32.mrb[0].mxu0
    %v1009 = vadd.f32 %v852, %v1008
    %v1010 = vpop.f32.mrb[0].mxu0
    %1011 = vdwg.mxu0
    %1012 = vmatprep.subr.mxu0 0.0
    %v1013 = vand.u32 %v48, 4294901760
    %v1014 = vsub.f32 %v48, %v1013
    %1015 = vmatpush1.msra.mxu0 %v1014
    %1016 = vmatprep.subr.mxu0 0.0
    %v1017 = vand.u32 %v49, 4294901760
    %v1018 = vsub.f32 %v49, %v1017
    %1019 = vmatpush1.msra.mxu0 %v1018
    %1020 = vmatprep.subr.mxu0 0.0
    %v1021 = vand.u32 %v50, 4294901760
    %v1022 = vsub.f32 %v50, %v1021
    %1023 = vmatpush1.msra.mxu0 %v1022
    %1024 = vmatprep.subr.mxu0 0.0
    %v1025 = vand.u32 %v51, 4294901760
    %v1026 = vsub.f32 %v51, %v1025
    %1027 = vmatpush1.msra.mxu0 %v1026
    %1028 = vmatprep.subr.mxu0 0.0
    %v1029 = vand.u32 %v52, 4294901760
    %v1030 = vsub.f32 %v52, %v1029
    %1031 = vmatpush1.msra.mxu0 %v1030
    %1032 = vmatprep.subr.mxu0 0.0
    %v1033 = vand.u32 %v53, 4294901760
    %v1034 = vsub.f32 %v53, %v1033
    %1035 = vmatpush1.msra.mxu0 %v1034
    %1036 = vmatprep.subr.mxu0 0.0
    %v1037 = vand.u32 %v54, 4294901760
    %v1038 = vsub.f32 %v54, %v1037
    %1039 = vmatpush1.msra.mxu0 %v1038
    %1040 = vmatprep.subr.mxu0 0.0
    %v1041 = vand.u32 %v55, 4294901760
    %v1042 = vsub.f32 %v55, %v1041
    %1043 = vmatpush1.msra.mxu0 %v1042
    %1044 = vmatprep.subr.mxu0 0.0
    %v1045 = vand.u32 %v56, 4294901760
    %v1046 = vsub.f32 %v56, %v1045
    %1047 = vmatpush1.msra.mxu0 %v1046
    %1048 = vmatprep.subr.mxu0 0.0
    %v1049 = vand.u32 %v57, 4294901760
    %v1050 = vsub.f32 %v57, %v1049
    %1051 = vmatpush1.msra.mxu0 %v1050
    %1052 = vmatprep.subr.mxu0 0.0
    %v1053 = vand.u32 %v58, 4294901760
    %v1054 = vsub.f32 %v58, %v1053
    %1055 = vmatpush1.msra.mxu0 %v1054
    %1056 = vmatprep.subr.mxu0 0.0
    %v1057 = vand.u32 %v59, 4294901760
    %v1058 = vsub.f32 %v59, %v1057
    %1059 = vmatpush1.msra.mxu0 %v1058
    %1060 = vmatprep.subr.mxu0 0.0
    %v1061 = vand.u32 %v60, 4294901760
    %v1062 = vsub.f32 %v60, %v1061
    %1063 = vmatpush1.msra.mxu0 %v1062
    %1064 = vmatprep.subr.mxu0 0.0
    %v1065 = vand.u32 %v61, 4294901760
    %v1066 = vsub.f32 %v61, %v1065
    %1067 = vmatpush1.msra.mxu0 %v1066
    %1068 = vmatprep.subr.mxu0 0.0
    %v1069 = vand.u32 %v62, 4294901760
    %v1070 = vsub.f32 %v62, %v1069
    %1071 = vmatpush1.msra.mxu0 %v1070
    %1072 = vmatprep.subr.mxu0 0.0
    %v1073 = vand.u32 %v63, 4294901760
    %v1074 = vsub.f32 %v63, %v1073
    %1075 = vmatpush1.msra.mxu0 %v1074
    %1076 = vmatprep.subr.mxu0 0.0
    %1077 = vmatpush1.msra.mxu0 0.0
    %1078 = vmatprep.subr.mxu0 0.0
    %1079 = vmatpush1.msra.mxu0 0.0
    %1080 = vmatprep.subr.mxu0 0.0
    %1081 = vmatpush1.msra.mxu0 0.0
    %1082 = vmatprep.subr.mxu0 0.0
    %1083 = vmatpush1.msra.mxu0 0.0
    %1084 = vmatprep.subr.mxu0 0.0
    %1085 = vmatpush1.msra.mxu0 0.0
    %1086 = vmatprep.subr.mxu0 0.0
    %1087 = vmatpush1.msra.mxu0 0.0
    %1088 = vmatprep.subr.mxu0 0.0
    %1089 = vmatpush1.msra.mxu0 0.0
    %1090 = vmatprep.subr.mxu0 0.0
    %1091 = vmatpush1.msra.mxu0 0.0
    %1092 = vmatprep.subr.mxu0 0.0
    %1093 = vmatpush1.msra.mxu0 0.0
    %1094 = vmatprep.subr.mxu0 0.0
    %1095 = vmatpush1.msra.mxu0 0.0
    %1096 = vmatprep.subr.mxu0 0.0
    %1097 = vmatpush1.msra.mxu0 0.0
    %1098 = vmatprep.subr.mxu0 0.0
    %1099 = vmatpush1.msra.mxu0 0.0
    %1100 = vmatprep.subr.mxu0 0.0
    %1101 = vmatpush1.msra.mxu0 0.0
    %1102 = vmatprep.subr.mxu0 0.0
    %1103 = vmatpush1.msra.mxu0 0.0
    %1104 = vmatprep.subr.mxu0 0.0
    %1105 = vmatpush1.msra.mxu0 0.0
    %1106 = vmatprep.subr.mxu0 0.0
    %1107 = vmatpush1.msra.mxu0 0.0
    %1108 = vmatprep.mubr.f32.mxu0 0.0
    %v1109 = vand.u32 %v752, 4294901760
    %v1110 = vsub.f32 %v752, %v1109
    %1111 = vmatmul.mubr.f32.gmra.mrb[0].mxu0 %v1110
    %v1112 = vpop.f32.mrb[0].mxu0
    %v1113 = vadd.f32 %v1003, %v1112
    %v1114 = vpop.f32.mrb[0].mxu0
    %1115 = vmatprep.mubr.f32.mxu0 0.0
    %v1116 = vand.u32 %v753, 4294901760
    %v1117 = vsub.f32 %v753, %v1116
    %1118 = vmatmul.mubr.f32.gmra.mrb[0].mxu0 %v1117
    %v1119 = vpop.f32.mrb[0].mxu0
    %v1120 = vadd.f32 %v1009, %v1119
    %v1121 = vpop.f32.mrb[0].mxu0
    %1122 = vdwg.mxu0
    %1123 = vmatprep.subr.mxu0 0.0
    %v1124 = vand.u32 %v48, 4294901760
    %1125 = vmatpush1.msra.mxu0 %v1124
    %1126 = vmatprep.subr.mxu0 0.0
    %v1127 = vand.u32 %v49, 4294901760
    %1128 = vmatpush1.msra.mxu0 %v1127
    %1129 = vmatprep.subr.mxu0 0.0
    %v1130 = vand.u32 %v50, 4294901760
    %1131 = vmatpush1.msra.mxu0 %v1130
    %1132 = vmatprep.subr.mxu0 0.0
    %v1133 = vand.u32 %v51, 4294901760
    %1134 = vmatpush1.msra.mxu0 %v1133
    %1135 = vmatprep.subr.mxu0 0.0
    %v1136 = vand.u32 %v52, 4294901760
    %1137 = vmatpush1.msra.mxu0 %v1136
    %1138 = vmatprep.subr.mxu0 0.0
    %v1139 = vand.u32 %v53, 4294901760
    %1140 = vmatpush1.msra.mxu0 %v1139
    %1141 = vmatprep.subr.mxu0 0.0
    %v1142 = vand.u32 %v54, 4294901760
    %1143 = vmatpush1.msra.mxu0 %v1142
    %1144 = vmatprep.subr.mxu0 0.0
    %v1145 = vand.u32 %v55, 4294901760
    %1146 = vmatpush1.msra.mxu0 %v1145
    %1147 = vmatprep.subr.mxu0 0.0
    %v1148 = vand.u32 %v56, 4294901760
    %1149 = vmatpush1.msra.mxu0 %v1148
    %1150 = vmatprep.subr.mxu0 0.0
    %v1151 = vand.u32 %v57, 4294901760
    %1152 = vmatpush1.msra.mxu0 %v1151
    %1153 = vmatprep.subr.mxu0 0.0
    %v1154 = vand.u32 %v58, 4294901760
    %1155 = vmatpush1.msra.mxu0 %v1154
    %1156 = vmatprep.subr.mxu0 0.0
    %v1157 = vand.u32 %v59, 4294901760
    %1158 = vmatpush1.msra.mxu0 %v1157
    %1159 = vmatprep.subr.mxu0 0.0
    %v1160 = vand.u32 %v60, 4294901760
    %1161 = vmatpush1.msra.mxu0 %v1160
    %1162 = vmatprep.subr.mxu0 0.0
    %v1163 = vand.u32 %v61, 4294901760
    %1164 = vmatpush1.msra.mxu0 %v1163
    %1165 = vmatprep.subr.mxu0 0.0
    %v1166 = vand.u32 %v62, 4294901760
    %1167 = vmatpush1.msra.mxu0 %v1166
    %1168 = vmatprep.subr.mxu0 0.0
    %v1169 = vand.u32 %v63, 4294901760
    %1170 = vmatpush1.msra.mxu0 %v1169
    %1171 = vmatprep.subr.mxu0 0.0
    %1172 = vmatpush1.msra.mxu0 0.0
    %1173 = vmatprep.subr.mxu0 0.0
    %1174 = vmatpush1.msra.mxu0 0.0
    %1175 = vmatprep.subr.mxu0 0.0
    %1176 = vmatpush1.msra.mxu0 0.0
    %1177 = vmatprep.subr.mxu0 0.0
    %1178 = vmatpush1.msra.mxu0 0.0
    %1179 = vmatprep.subr.mxu0 0.0
    %1180 = vmatpush1.msra.mxu0 0.0
    %1181 = vmatprep.subr.mxu0 0.0
    %1182 = vmatpush1.msra.mxu0 0.0
    %1183 = vmatprep.subr.mxu0 0.0
    %1184 = vmatpush1.msra.mxu0 0.0
    %1185 = vmatprep.subr.mxu0 0.0
    %1186 = vmatpush1.msra.mxu0 0.0
    %1187 = vmatprep.subr.mxu0 0.0
    %1188 = vmatpush1.msra.mxu0 0.0
    %1189 = vmatprep.subr.mxu0 0.0
    %1190 = vmatpush1.msra.mxu0 0.0
    %1191 = vmatprep.subr.mxu0 0.0
    %1192 = vmatpush1.msra.mxu0 0.0
    %1193 = vmatprep.subr.mxu0 0.0
    %1194 = vmatpush1.msra.mxu0 0.0
    %1195 = vmatprep.subr.mxu0 0.0
    %1196 = vmatpush1.msra.mxu0 0.0
    %1197 = vmatprep.subr.mxu0 0.0
    %1198 = vmatpush1.msra.mxu0 0.0
    %1199 = vmatprep.subr.mxu0 0.0
    %1200 = vmatpush1.msra.mxu0 0.0
    %1201 = vmatprep.subr.mxu0 0.0
    %1202 = vmatpush1.msra.mxu0 0.0
    %1203 = vmatprep.mubr.f32.mxu0 0.0
    %v1204 = vand.u32 %v752, 4294901760
    %v1205 = vsub.f32 %v752, %v1204
    %v1206 = vand.u32 %v1205, 4294901760
    %1207 = vmatmul.mubr.f32.gmra.mrb[0].mxu0 %v1206
    %v1208 = vpop.f32.mrb[0].mxu0
    %v1209 = vadd.f32 %v1113, %v1208
    %v1210 = vpop.f32.mrb[0].mxu0
    %1211 = vmatprep.mubr.f32.mxu0 0.0
    %v1212 = vand.u32 %v753, 4294901760
    %v1213 = vsub.f32 %v753, %v1212
    %v1214 = vand.u32 %v1213, 4294901760
    %1215 = vmatmul.mubr.f32.gmra.mrb[0].mxu0 %v1214
    %v1216 = vpop.f32.mrb[0].mxu0
    %v1217 = vadd.f32 %v1120, %v1216
    %v1218 = vpop.f32.mrb[0].mxu0
    %1219 = vdwg.mxu0
    %1220 = vmatprep.subr.mxu0 0.0
    %v1221 = vand.u32 %v48, 4294901760
    %v1222 = vsub.f32 %v48, %v1221
    %v1223 = vand.u32 %v1222, 4294901760
    %1224 = vmatpush1.msra.mxu0 %v1223
    %1225 = vmatprep.subr.mxu0 0.0
    %v1226 = vand.u32 %v49, 4294901760
    %v1227 = vsub.f32 %v49, %v1226
    %v1228 = vand.u32 %v1227, 4294901760
    %1229 = vmatpush1.msra.mxu0 %v1228
    %1230 = vmatprep.subr.mxu0 0.0
    %v1231 = vand.u32 %v50, 4294901760
    %v1232 = vsub.f32 %v50, %v1231
    %v1233 = vand.u32 %v1232, 4294901760
    %1234 = vmatpush1.msra.mxu0 %v1233
    %1235 = vmatprep.subr.mxu0 0.0
    %v1236 = vand.u32 %v51, 4294901760
    %v1237 = vsub.f32 %v51, %v1236
    %v1238 = vand.u32 %v1237, 4294901760
    %1239 = vmatpush1.msra.mxu0 %v1238
    %1240 = vmatprep.subr.mxu0 0.0
    %v1241 = vand.u32 %v52, 4294901760
    %v1242 = vsub.f32 %v52, %v1241
    %v1243 = vand.u32 %v1242, 4294901760
    %1244 = vmatpush1.msra.mxu0 %v1243
    %1245 = vmatprep.subr.mxu0 0.0
    %v1246 = vand.u32 %v53, 4294901760
    %v1247 = vsub.f32 %v53, %v1246
    %v1248 = vand.u32 %v1247, 4294901760
    %1249 = vmatpush1.msra.mxu0 %v1248
    %1250 = vmatprep.subr.mxu0 0.0
    %v1251 = vand.u32 %v54, 4294901760
    %v1252 = vsub.f32 %v54, %v1251
    %v1253 = vand.u32 %v1252, 4294901760
    %1254 = vmatpush1.msra.mxu0 %v1253
    %1255 = vmatprep.subr.mxu0 0.0
    %v1256 = vand.u32 %v55, 4294901760
    %v1257 = vsub.f32 %v55, %v1256
    %v1258 = vand.u32 %v1257, 4294901760
    %1259 = vmatpush1.msra.mxu0 %v1258
    %1260 = vmatprep.subr.mxu0 0.0
    %v1261 = vand.u32 %v56, 4294901760
    %v1262 = vsub.f32 %v56, %v1261
    %v1263 = vand.u32 %v1262, 4294901760
    %1264 = vmatpush1.msra.mxu0 %v1263
    %1265 = vmatprep.subr.mxu0 0.0
    %v1266 = vand.u32 %v57, 4294901760
    %v1267 = vsub.f32 %v57, %v1266
    %v1268 = vand.u32 %v1267, 4294901760
    %1269 = vmatpush1.msra.mxu0 %v1268
    %1270 = vmatprep.subr.mxu0 0.0
    %v1271 = vand.u32 %v58, 4294901760
    %v1272 = vsub.f32 %v58, %v1271
    %v1273 = vand.u32 %v1272, 4294901760
    %1274 = vmatpush1.msra.mxu0 %v1273
    %1275 = vmatprep.subr.mxu0 0.0
    %v1276 = vand.u32 %v59, 4294901760
    %v1277 = vsub.f32 %v59, %v1276
    %v1278 = vand.u32 %v1277, 4294901760
    %1279 = vmatpush1.msra.mxu0 %v1278
    %1280 = vmatprep.subr.mxu0 0.0
    %v1281 = vand.u32 %v60, 4294901760
    %v1282 = vsub.f32 %v60, %v1281
    %v1283 = vand.u32 %v1282, 4294901760
    %1284 = vmatpush1.msra.mxu0 %v1283
    %1285 = vmatprep.subr.mxu0 0.0
    %v1286 = vand.u32 %v61, 4294901760
    %v1287 = vsub.f32 %v61, %v1286
    %v1288 = vand.u32 %v1287, 4294901760
    %1289 = vmatpush1.msra.mxu0 %v1288
    %1290 = vmatprep.subr.mxu0 0.0
    %v1291 = vand.u32 %v62, 4294901760
    %v1292 = vsub.f32 %v62, %v1291
    %v1293 = vand.u32 %v1292, 4294901760
    %1294 = vmatpush1.msra.mxu0 %v1293
    %1295 = vmatprep.subr.mxu0 0.0
    %v1296 = vand.u32 %v63, 4294901760
    %v1297 = vsub.f32 %v63, %v1296
    %v1298 = vand.u32 %v1297, 4294901760
    %1299 = vmatpush1.msra.mxu0 %v1298
    %1300 = vmatprep.subr.mxu0 0.0
    %1301 = vmatpush1.msra.mxu0 0.0
    %1302 = vmatprep.subr.mxu0 0.0
    %1303 = vmatpush1.msra.mxu0 0.0
    %1304 = vmatprep.subr.mxu0 0.0
    %1305 = vmatpush1.msra.mxu0 0.0
    %1306 = vmatprep.subr.mxu0 0.0
    %1307 = vmatpush1.msra.mxu0 0.0
    %1308 = vmatprep.subr.mxu0 0.0
    %1309 = vmatpush1.msra.mxu0 0.0
    %1310 = vmatprep.subr.mxu0 0.0
    %1311 = vmatpush1.msra.mxu0 0.0
    %1312 = vmatprep.subr.mxu0 0.0
    %1313 = vmatpush1.msra.mxu0 0.0
    %1314 = vmatprep.subr.mxu0 0.0
    %1315 = vmatpush1.msra.mxu0 0.0
    %1316 = vmatprep.subr.mxu0 0.0
    %1317 = vmatpush1.msra.mxu0 0.0
    %1318 = vmatprep.subr.mxu0 0.0
    %1319 = vmatpush1.msra.mxu0 0.0
    %1320 = vmatprep.subr.mxu0 0.0
    %1321 = vmatpush1.msra.mxu0 0.0
    %1322 = vmatprep.subr.mxu0 0.0
    %1323 = vmatpush1.msra.mxu0 0.0
    %1324 = vmatprep.subr.mxu0 0.0
    %1325 = vmatpush1.msra.mxu0 0.0
    %1326 = vmatprep.subr.mxu0 0.0
    %1327 = vmatpush1.msra.mxu0 0.0
    %1328 = vmatprep.subr.mxu0 0.0
    %1329 = vmatpush1.msra.mxu0 0.0
    %1330 = vmatprep.subr.mxu0 0.0
    %1331 = vmatpush1.msra.mxu0 0.0
    %1332 = vmatprep.mubr.f32.mxu0 0.0
    %v1333 = vand.u32 %v752, 4294901760
    %1334 = vmatmul.mubr.f32.gmra.mrb[0].mxu0 %v1333
    %v1335 = vpop.f32.mrb[0].mxu0
    %v1336 = vadd.f32 %v1209, %v1335
    %v1337 = vpop.f32.mrb[0].mxu0
    %1338 = vmatprep.mubr.f32.mxu0 0.0
    %v1339 = vand.u32 %v753, 4294901760
    %1340 = vmatmul.mubr.f32.gmra.mrb[0].mxu0 %v1339
    %v1341 = vpop.f32.mrb[0].mxu0
    %v1342 = vadd.f32 %v1217, %v1341
    %v1343 = vpop.f32.mrb[0].mxu0
    %1344 = vdwg.mxu0
    %1345 = vmatprep.subr.mxu0 0.0
    %v1346 = vand.u32 %v48, 4294901760
    %1347 = vmatpush1.msra.mxu0 %v1346
    %1348 = vmatprep.subr.mxu0 0.0
    %v1349 = vand.u32 %v49, 4294901760
    %1350 = vmatpush1.msra.mxu0 %v1349
    %1351 = vmatprep.subr.mxu0 0.0
    %v1352 = vand.u32 %v50, 4294901760
    %1353 = vmatpush1.msra.mxu0 %v1352
    %1354 = vmatprep.subr.mxu0 0.0
    %v1355 = vand.u32 %v51, 4294901760
    %1356 = vmatpush1.msra.mxu0 %v1355
    %1357 = vmatprep.subr.mxu0 0.0
    %v1358 = vand.u32 %v52, 4294901760
    %1359 = vmatpush1.msra.mxu0 %v1358
    %1360 = vmatprep.subr.mxu0 0.0
    %v1361 = vand.u32 %v53, 4294901760
    %1362 = vmatpush1.msra.mxu0 %v1361
    %1363 = vmatprep.subr.mxu0 0.0
    %v1364 = vand.u32 %v54, 4294901760
    %1365 = vmatpush1.msra.mxu0 %v1364
    %1366 = vmatprep.subr.mxu0 0.0
    %v1367 = vand.u32 %v55, 4294901760
    %1368 = vmatpush1.msra.mxu0 %v1367
    %1369 = vmatprep.subr.mxu0 0.0
    %v1370 = vand.u32 %v56, 4294901760
    %1371 = vmatpush1.msra.mxu0 %v1370
    %1372 = vmatprep.subr.mxu0 0.0
    %v1373 = vand.u32 %v57, 4294901760
    %1374 = vmatpush1.msra.mxu0 %v1373
    %1375 = vmatprep.subr.mxu0 0.0
    %v1376 = vand.u32 %v58, 4294901760
    %1377 = vmatpush1.msra.mxu0 %v1376
    %1378 = vmatprep.subr.mxu0 0.0
    %v1379 = vand.u32 %v59, 4294901760
    %1380 = vmatpush1.msra.mxu0 %v1379
    %1381 = vmatprep.subr.mxu0 0.0
    %v1382 = vand.u32 %v60, 4294901760
    %1383 = vmatpush1.msra.mxu0 %v1382
    %1384 = vmatprep.subr.mxu0 0.0
    %v1385 = vand.u32 %v61, 4294901760
    %1386 = vmatpush1.msra.mxu0 %v1385
    %1387 = vmatprep.subr.mxu0 0.0
    %v1388 = vand.u32 %v62, 4294901760
    %1389 = vmatpush1.msra.mxu0 %v1388
    %1390 = vmatprep.subr.mxu0 0.0
    %v1391 = vand.u32 %v63, 4294901760
    %1392 = vmatpush1.msra.mxu0 %v1391
    %1393 = vmatprep.subr.mxu0 0.0
    %1394 = vmatpush1.msra.mxu0 0.0
    %1395 = vmatprep.subr.mxu0 0.0
    %1396 = vmatpush1.msra.mxu0 0.0
    %1397 = vmatprep.subr.mxu0 0.0
    %1398 = vmatpush1.msra.mxu0 0.0
    %1399 = vmatprep.subr.mxu0 0.0
    %1400 = vmatpush1.msra.mxu0 0.0
    %1401 = vmatprep.subr.mxu0 0.0
    %1402 = vmatpush1.msra.mxu0 0.0
    %1403 = vmatprep.subr.mxu0 0.0
    %1404 = vmatpush1.msra.mxu0 0.0
    %1405 = vmatprep.subr.mxu0 0.0
    %1406 = vmatpush1.msra.mxu0 0.0
    %1407 = vmatprep.subr.mxu0 0.0
    %1408 = vmatpush1.msra.mxu0 0.0
    %1409 = vmatprep.subr.mxu0 0.0
    %1410 = vmatpush1.msra.mxu0 0.0
    %1411 = vmatprep.subr.mxu0 0.0
    %1412 = vmatpush1.msra.mxu0 0.0
    %1413 = vmatprep.subr.mxu0 0.0
    %1414 = vmatpush1.msra.mxu0 0.0
    %1415 = vmatprep.subr.mxu0 0.0
    %1416 = vmatpush1.msra.mxu0 0.0
    %1417 = vmatprep.subr.mxu0 0.0
    %1418 = vmatpush1.msra.mxu0 0.0
    %1419 = vmatprep.subr.mxu0 0.0
    %1420 = vmatpush1.msra.mxu0 0.0
    %1421 = vmatprep.subr.mxu0 0.0
    %1422 = vmatpush1.msra.mxu0 0.0
    %1423 = vmatprep.subr.mxu0 0.0
    %1424 = vmatpush1.msra.mxu0 0.0
    %1425 = vmatprep.mubr.f32.mxu0 0.0
    %v1426 = vand.u32 %v752, 4294901760
    %1427 = vmatmul.mubr.f32.gmra.mrb[0].mxu0 %v1426
    %v1428 = vpop.f32.mrb[0].mxu0
    %v1429 = vadd.f32 %v1336, %v1428
    %v1430 = vpop.f32.mrb[0].mxu0
    %1431 = vmatprep.mubr.f32.mxu0 0.0
    %v1432 = vand.u32 %v753, 4294901760
    %1433 = vmatmul.mubr.f32.gmra.mrb[0].mxu0 %v1432
    %v1434 = vpop.f32.mrb[0].mxu0
    %v1435 = vadd.f32 %v1342, %v1434
    %v1436 = vpop.f32.mrb[0].mxu0
    %1437 = vdwg.mxu0
    %v1438 = vmul.f32 %v1429, 0.03125
    %v1439 = vmul.f32 %v1435, 0.03125
    %v1440 = vadd.f32 %v1438, 1e-05
    %v1441 = vadd.f32 %v1439, 1e-05
    %v1442 = vrsqrt.pop %v1440
    %v1443 = vrsqrt.pop %v1441
    %v1444 = vld [vmem:[%s1] sm:$0x1]
    %v1445 = vmul.f32 %v750, %v1442
    %v1446 = vmul.f32 %v751, %v1443
    %v1448 = vlaneseq
    %v1449 = vshrl.u32 %v1448, 7
    %v1450 = vsub.s32 0, %v1449
    %v1451 = vrot.slane %v1444, %v1450
    %v1453 = vmul.f32 %v1451, %v1445
    %v1454 = vmul.f32 %v1451, %v1446
    %v1455 = vld [vmem:[%s2] sm:$0x1]
    %v1457 = vlaneseq
    %v1458 = vshrl.u32 %v1457, 7
    %v1459 = vsub.s32 0, %v1458
    %v1460 = vrot.slane %v1455, %v1459
    %v1462 = vadd.f32 %v1453, %v1460
    %v1463 = vadd.f32 %v1454, %v1460
    %1464 = vst [vmem:[#allocation7] sm:$0xff] %v1462
    %1465 = vst [vmem:[#allocation7 + $0x8] sm:$0xff] %v1463
    // Predicated region
    $region26: #{tpu_custom_call.1} parent=1 // pred_check
      _
    $region27: #{tpu_custom_call.1} parent=1 // pred_check_branch
      %1467 = sbr.rel (0) target = $region29
    $region28: #{tpu_custom_call.1} parent=1 // pred_region
      %s1469 = ssub.s32 256, 256
      %1470 = vsyncadd [#allocation4], %s1469
      %s1471 = sshll.u32 [#allocation7], 4
      %s1472 = int_to_ptr.vmem [resolvable:$true] %s1471
      %1477 = dma.vmem_to_hbm [thread:$0]  %s1472, 256, %s4, [#allocation4], 128, 128, 8
    $region29: #{tpu_custom_call.1} parent=1 // pred_fallthru
      _
    // Predicated region
    $region30: #{tpu_custom_call.1} parent=1 // pred_check
      _
    $region31: #{tpu_custom_call.1} parent=1 // pred_check_branch
      %1479 = sbr.rel (0) target = $region33
    $region32: #{tpu_custom_call.1} parent=1 // pred_region
      %1480 = dma.done [#allocation4], 256
    $region33: #{tpu_custom_call.1} parent=1 // pred_fallthru
      _
    %1481 = vsyncpa [#allocation3], 1
    %1482 = vsyncpa [#allocation6], 1
    %1483 = vsyncpa [#allocation4], 1

</llo_original>
